<compile_context>
chip_gen: v5e
topology: v5e:2x2
jax: 0.10.0
libtpu: 0.0.40
codegen_flags: <defaults>
</compile_context>

<pallas_src>
import functools

import jax
import jax.numpy as jnp
from jax.experimental import pallas as pl
from jax.experimental.pallas import tpu as pltpu

_LANE = 128     # lane width (last dim)
_SUBLANE = 8    # sublane granularity used for batch tiling


def _round_up(x, m):
    return ((x + m - 1) // m) * m


def _cdiv(a, b):
    return (a + b - 1) // b


def _detect_chip():
    """Best-effort TPU generation detection; defaults to v6e-like behaviour."""
    try:
        kind = jax.devices()[0].device_kind.lower()
    except Exception:
        return "v6e"
    if "v5 lite" in kind or "v5lite" in kind or "v5e" in kind:
        return "v5e"
    if "v7" in kind:
        return "v7x"
    if "v6" in kind:
        return "v6e"
    return "v6e"


def _pick_batch_tiling(B, chip):
    """Pick (tile_b, b_pad) minimizing padding while filling the MXU per gen."""
    cap = 128 if chip == "v5e" else 256          # v6e/v7x MXU pass is 256 wide
    b_aligned = _round_up(B, _SUBLANE)
    n_tiles = max(1, _cdiv(b_aligned, cap))
    if chip == "v7x" and B >= 16:
        # >=2 grid steps so dimension_semantics=("parallel",) can use both TCs.
        n_tiles = max(n_tiles, 2)
    tile_b = _round_up(_cdiv(b_aligned, n_tiles), _SUBLANE)
    n_tiles = _cdiv(b_aligned, tile_b)
    return tile_b, tile_b * n_tiles


def _fused_mlp_kernel(*refs, num_hidden):
    """refs = (x, w0, [w_hidden_stack], w_last, bias_packed, out).

    Whole MLP for one batch tile; intermediates never leave VMEM/vregs.
    Matmul operands are bf16, accumulation and the bias+ReLU epilogue are f32.
    """
    it = iter(refs)
    x_ref = next(it)
    w0_ref = next(it)
    stack_ref = next(it) if num_hidden > 0 else None
    wlast_ref = next(it)
    b_ref = next(it)          # (8-padded, 128-padded) packed biases, f32
    o_ref = next(it)

    def layer(h, w, layer_idx, relu):
        acc = jnp.dot(h, w, preferred_element_type=jnp.float32)        # MXU (bf16 in, f32 acc)
        acc = acc + b_ref[layer_idx:layer_idx + 1, :w.shape[-1]]        # f32 epilogue (VPU)
        if relu:
            acc = jnp.maximum(acc, 0.0)
        return acc

    h = layer(x_ref[...], w0_ref[...], 0, relu=True)
    for j in range(num_hidden):                                          # static unroll
        h = layer(h.astype(jnp.bfloat16), stack_ref[j], j + 1, relu=True)
    h = layer(h.astype(jnp.bfloat16), wlast_ref[...], num_hidden + 1, relu=False)
    o_ref[...] = h.astype(o_ref.dtype)


def init_mlp_params(key, layers_num, hidden, input_channels, input_sizes, classes):
    """Mirror nn.Linear default init: U(-1/sqrt(fan_in), +1/sqrt(fan_in)).

    Weights stored as (in_features, out_features) so the kernel computes
    y = x @ W + b (same math as torch's x @ W_t.T + b)."""
    input_dim = input_channels * input_sizes[0] * input_sizes[1]
    dims = [input_dim] + [hidden] * layers_num + [classes]
    params = []
    for i in range(len(dims) - 1):
        fan_in, fan_out = dims[i], dims[i + 1]
        key, kw, kb = jax.random.split(key, 3)
        bound = 1.0 / (fan_in ** 0.5)
        w = jax.random.uniform(kw, (fan_in, fan_out), jnp.float32, -bound, bound)
        b = jax.random.uniform(kb, (fan_out,), jnp.float32, -bound, bound)
        params.append((w, b))
    return params


def _pack_params(params):
    """Zero-pad to lane multiples, cast weights to bf16, stack hidden weights,
    and pack all biases (f32) into one (8k, 128k) buffer."""
    ws, bs = [], []
    for w, b in params:
        fi, fo = w.shape
        fi_p = _round_up(fi, _LANE)
        fo_p = _round_up(fo, _LANE)
        ws.append(jnp.pad(w, ((0, fi_p - fi), (0, fo_p - fo))).astype(jnp.bfloat16))
        bs.append(jnp.pad(b, (0, fo_p - fo)).astype(jnp.float32))
    max_out = max(b.shape[0] for b in bs)
    rows = _round_up(len(bs), 8)
    packed = jnp.zeros((rows, max_out), jnp.float32)
    for i, b in enumerate(bs):
        packed = packed.at[i, :b.shape[0]].set(b)
    w0, w_last = ws[0], ws[-1]
    w_hidden = jnp.stack(ws[1:-1], axis=0) if len(ws) > 2 else None
    return w0, w_hidden, w_last, packed


def mlp_forward(x_nchw, params, layers_num, input_channels, input_sizes, classes):
    """Matches MLP.forward: flatten, then Linear(+ReLU) * layers_num, final Linear."""
    assert layers_num >= 1
    B = x_nchw.shape[0]
    input_dim = input_channels * input_sizes[0] * input_sizes[1]
    chip = _detect_chip()

    # Flatten (same as torch .view); matmul operands move to bf16.
    x = x_nchw.reshape(B, input_dim).astype(jnp.bfloat16)

    d_pad = _round_up(input_dim, _LANE)
    tile_b, b_pad = _pick_batch_tiling(B, chip)
    if b_pad != B or d_pad != input_dim:
        # Pad only what is strictly needed (zeros keep valid outputs exact,
        # ReLU(0)=0 preserves the zero padding between layers).
        x = jnp.pad(x, ((0, b_pad - B), (0, d_pad - input_dim)))

    w0, w_hidden, w_last, bias_packed = _pack_params(params)
    num_hidden = layers_num - 1
    classes_pad = w_last.shape[1]
    weight_inputs = [w0] + ([w_hidden] if w_hidden is not None else []) + [w_last]

    grid = (b_pad // tile_b,)
    kernel = functools.partial(_fused_mlp_kernel, num_hidden=num_hidden)

    # VMEM budget: streamed x/out tiles (double-buffered) + resident weights/bias.
    resident = sum(int(w.size) * w.dtype.itemsize for w in weight_inputs) \
        + int(bias_packed.size) * 4
    streamed = 2 * (tile_b * d_pad * 2 + tile_b * classes_pad * 4)
    vmem_limit = int(min(64 << 20, max(32 << 20, 2 * (2 * resident + streamed))))

    def run(single_buffer_constants):
        def const_spec(shape):
            imap = lambda i, _s=shape: (0,) * len(_s)
            if single_buffer_constants:
                # Constant-indexed blocks do not need double buffering.
                return pl.BlockSpec(shape, imap, pipeline_mode=pl.Buffered(buffer_count=1))
            return pl.BlockSpec(shape, imap)

        in_specs = [pl.BlockSpec((tile_b, d_pad), lambda i: (i, 0))]      # batch-tiled x
        in_specs += [const_spec(w.shape) for w in weight_inputs]          # resident weights
        in_specs.append(const_spec(bias_packed.shape))                    # packed biases

        return pl.pallas_call(
            kernel,
            out_shape=jax.ShapeDtypeStruct((b_pad, classes_pad), jnp.float32),
            grid_spec=pltpu.PrefetchScalarGridSpec(
                num_scalar_prefetch=0,
                grid=grid,
                in_specs=in_specs,
                out_specs=pl.BlockSpec((tile_b, classes_pad), lambda i: (i, 0)),
            ),
            compiler_params=pltpu.CompilerParams(
                dimension_semantics=("parallel",),     # shard batch tiles across TCs (v7x)
                vmem_limit_bytes=vmem_limit,
            ),
        )(x, *weight_inputs, bias_packed)

    try:
        out_p = run(single_buffer_constants=True)
    except Exception:
        # pipeline_mode=Buffered(1) unsupported on this jax build -> default buffering.
        out_p = run(single_buffer_constants=False)

    return out_p[:B, :classes]            # drop batch / class padding


if __name__ == "__main__":
    # Small shapes consistent with the module:
    # batch=2, channels=4, spatial=16x16, hidden=32, 2 hidden layers, 10 classes.
    layers_num = 2
    hidden = 32
    input_channels = 4
    input_sizes = (16, 16)
    classes = 10

    key = jax.random.PRNGKey(0)
    key, kx = jax.random.split(key)
    x = jax.random.normal(
        kx, (2, input_channels, input_sizes[0], input_sizes[1]), jnp.float32
    )

    params = init_mlp_params(
        key, layers_num, hidden, input_channels, input_sizes, classes
    )

    out = mlp_forward(x, params, layers_num, input_channels, input_sizes, classes)
    out = jax.block_until_ready(out)
    assert out.shape == (2, classes), out.shape

    # Pure-JAX f32 reference; bf16 matmul operands -> relaxed tolerance.
    def ref_forward(x_nchw):
        h = x_nchw.reshape(x_nchw.shape[0], -1)
        for i, (w, b) in enumerate(params):
            h = h @ w + b
            if i < layers_num:
                h = jnp.maximum(h, 0.0)
        return h

    ref = ref_forward(x)
    max_err = float(jnp.max(jnp.abs(out - ref)))
    assert jnp.allclose(out, ref, atol=2e-2, rtol=2e-2), max_err

    print("KERNEL_OK")
</pallas_src>

<mosaic_0001>
module attributes {stable_mosaic.version = 11 : i64} {
  func.func @_fused_mlp_kernel(%arg0: i32, %arg1: memref<8x1024xbf16, #tpu.memory_space<vmem>>, %arg2: memref<1024x128xbf16, #tpu.memory_space<vmem>>, %arg3: memref<1x128x128xbf16, #tpu.memory_space<vmem>>, %arg4: memref<128x128xbf16, #tpu.memory_space<vmem>>, %arg5: memref<8x128xf32, #tpu.memory_space<vmem>>, %arg6: memref<8x128xf32, #tpu.memory_space<vmem>>) attributes {dimension_semantics = [#tpu.dimension_semantics<parallel>], iteration_bounds = array<i64: 1>, scalar_prefetch = 0 : i64, scratch_operands = 0 : i64, tpu.core_type = #tpu.core_type<tc>, window_params = [{transform_indices = @transform_0, window_bounds = array<i64: 8, 1024>}, {pipeline_mode = #tpu.pipeline_mode<synchronous>, transform_indices = @transform_1, window_bounds = array<i64: 1024, 128>}, {pipeline_mode = #tpu.pipeline_mode<synchronous>, transform_indices = @transform_2, window_bounds = array<i64: 1, 128, 128>}, {pipeline_mode = #tpu.pipeline_mode<synchronous>, transform_indices = @transform_3, window_bounds = array<i64: 128, 128>}, {pipeline_mode = #tpu.pipeline_mode<synchronous>, transform_indices = @transform_4, window_bounds = array<i64: 8, 128>}, {transform_indices = @transform_5, window_bounds = array<i64: 8, 128>}]} {
    %c0 = arith.constant 0 : index
    %c0_0 = arith.constant 0 : index
    %0 = vector.load %arg1[%c0, %c0_0] : memref<8x1024xbf16, #tpu.memory_space<vmem>>, vector<8x1024xbf16>
    %c0_1 = arith.constant 0 : index
    %c0_2 = arith.constant 0 : index
    %1 = vector.load %arg2[%c0_1, %c0_2] : memref<1024x128xbf16, #tpu.memory_space<vmem>>, vector<1024x128xbf16>
    %cst = arith.constant dense<0.000000e+00> : vector<8x128xf32>
    %2 = tpu.matmul %0, %1, %cst {dimension_numbers = #tpu.dot_dimension_numbers<[1], [0], [0], [1], [0, 0, 1, 1], [], []>} : vector<8x1024xbf16>, vector<1024x128xbf16>, vector<8x128xf32> -> vector<8x128xf32>
    %c0_3 = arith.constant 0 : index
    %c0_4 = arith.constant 0 : index
    %3 = vector.load %arg5[%c0_3, %c0_4] : memref<8x128xf32, #tpu.memory_space<vmem>>, vector<1x128xf32>
    %4 = vector.broadcast %3 : vector<1x128xf32> to vector<8x128xf32>
    %5 = arith.addf %2, %4 : vector<8x128xf32>
    %cst_5 = arith.constant 0.000000e+00 : f32
    %6 = vector.broadcast %cst_5 : f32 to vector<8x128xf32>
    %7 = arith.maximumf %5, %6 : vector<8x128xf32>
    %8 = arith.truncf %7 : vector<8x128xf32> to vector<8x128xbf16>
    %c0_6 = arith.constant 0 : index
    %c0_7 = arith.constant 0 : index
    %c0_8 = arith.constant 0 : index
    %9 = vector.load %arg3[%c0_6, %c0_7, %c0_8] : memref<1x128x128xbf16, #tpu.memory_space<vmem>>, vector<1x128x128xbf16>
    %10 = vector.shape_cast %9 : vector<1x128x128xbf16> to vector<128x128xbf16>
    %cst_9 = arith.constant dense<0.000000e+00> : vector<8x128xf32>
    %11 = tpu.matmul %8, %10, %cst_9 {dimension_numbers = #tpu.dot_dimension_numbers<[1], [0], [0], [1], [0, 0, 1, 1], [], []>} : vector<8x128xbf16>, vector<128x128xbf16>, vector<8x128xf32> -> vector<8x128xf32>
    %c1 = arith.constant 1 : index
    %c0_10 = arith.constant 0 : index
    %12 = vector.load %arg5[%c1, %c0_10] : memref<8x128xf32, #tpu.memory_space<vmem>>, vector<1x128xf32>
    %13 = vector.broadcast %12 : vector<1x128xf32> to vector<8x128xf32>
    %14 = arith.addf %11, %13 : vector<8x128xf32>
    %cst_11 = arith.constant 0.000000e+00 : f32
    %15 = vector.broadcast %cst_11 : f32 to vector<8x128xf32>
    %16 = arith.maximumf %14, %15 : vector<8x128xf32>
    %17 = arith.truncf %16 : vector<8x128xf32> to vector<8x128xbf16>
    %c0_12 = arith.constant 0 : index
    %c0_13 = arith.constant 0 : index
    %18 = vector.load %arg4[%c0_12, %c0_13] : memref<128x128xbf16, #tpu.memory_space<vmem>>, vector<128x128xbf16>
    %cst_14 = arith.constant dense<0.000000e+00> : vector<8x128xf32>
    %19 = tpu.matmul %17, %18, %cst_14 {dimension_numbers = #tpu.dot_dimension_numbers<[1], [0], [0], [1], [0, 0, 1, 1], [], []>} : vector<8x128xbf16>, vector<128x128xbf16>, vector<8x128xf32> -> vector<8x128xf32>
    %c2 = arith.constant 2 : index
    %c0_15 = arith.constant 0 : index
    %20 = vector.load %arg5[%c2, %c0_15] : memref<8x128xf32, #tpu.memory_space<vmem>>, vector<1x128xf32>
    %21 = vector.broadcast %20 : vector<1x128xf32> to vector<8x128xf32>
    %22 = arith.addf %19, %21 : vector<8x128xf32>
    %c0_16 = arith.constant 0 : index
    %c0_17 = arith.constant 0 : index
    %23 = vector.load %arg6[%c0_16, %c0_17] : memref<8x128xf32, #tpu.memory_space<vmem>>, vector<8x128xf32>
    tpu.vector_store %arg6[%c0_16, %c0_17], %22 {strides = array<i32>} : memref<8x128xf32, #tpu.memory_space<vmem>>, vector<8x128xf32>,
    return
  }
  func.func @transform_0(%arg0: i32) -> (i32, i32) {
    %c0_i32 = arith.constant 0 : i32
    %c0_i32_0 = arith.constant 0 : i32
    return %arg0, %c0_i32 : i32, i32
  }
  func.func @transform_1(%arg0: i32) -> (i32, i32) {
    %c0_i32 = arith.constant 0 : i32
    %c0_i32_0 = arith.constant 0 : i32
    %c0_i32_1 = arith.constant 0 : i32
    return %c0_i32, %c0_i32_0 : i32, i32
  }
  func.func @transform_2(%arg0: i32) -> (i32, i32, i32) {
    %c0_i32 = arith.constant 0 : i32
    %c0_i32_0 = arith.constant 0 : i32
    %c0_i32_1 = arith.constant 0 : i32
    %c0_i32_2 = arith.constant 0 : i32
    return %c0_i32, %c0_i32_0, %c0_i32_1 : i32, i32, i32
  }
  func.func @transform_3(%arg0: i32) -> (i32, i32) {
    %c0_i32 = arith.constant 0 : i32
    %c0_i32_0 = arith.constant 0 : i32
    %c0_i32_1 = arith.constant 0 : i32
    return %c0_i32, %c0_i32_0 : i32, i32
  }
  func.func @transform_4(%arg0: i32) -> (i32, i32) {
    %c0_i32 = arith.constant 0 : i32
    %c0_i32_0 = arith.constant 0 : i32
    %c0_i32_1 = arith.constant 0 : i32
    return %c0_i32, %c0_i32_0 : i32, i32
  }
  func.func @transform_5(%arg0: i32) -> (i32, i32) {
    %c0_i32 = arith.constant 0 : i32
    %c0_i32_0 = arith.constant 0 : i32
    return %arg0, %c0_i32 : i32, i32
  }
}

module attributes {stable_mosaic.version = 11 : i64} {
  func.func @_fused_mlp_kernel(%arg0: i32, %arg1: memref<8x1024xbf16, #tpu.memory_space<vmem>>, %arg2: memref<1024x128xbf16, #tpu.memory_space<vmem>>, %arg3: memref<1x128x128xbf16, #tpu.memory_space<vmem>>, %arg4: memref<128x128xbf16, #tpu.memory_space<vmem>>, %arg5: memref<8x128xf32, #tpu.memory_space<vmem>>, %arg6: memref<8x128xf32, #tpu.memory_space<vmem>>) attributes {dimension_semantics = [#tpu.dimension_semantics<parallel>], iteration_bounds = array<i64: 1>, scalar_prefetch = 0 : i64, scratch_operands = 0 : i64, tpu.core_type = #tpu.core_type<tc>, window_params = [{transform_indices = @transform_0, window_bounds = array<i64: 8, 1024>}, {pipeline_mode = #tpu.pipeline_mode<synchronous>, transform_indices = @transform_1, window_bounds = array<i64: 1024, 128>}, {pipeline_mode = #tpu.pipeline_mode<synchronous>, transform_indices = @transform_2, window_bounds = array<i64: 1, 128, 128>}, {pipeline_mode = #tpu.pipeline_mode<synchronous>, transform_indices = @transform_3, window_bounds = array<i64: 128, 128>}, {pipeline_mode = #tpu.pipeline_mode<synchronous>, transform_indices = @transform_4, window_bounds = array<i64: 8, 128>}, {transform_indices = @transform_5, window_bounds = array<i64: 8, 128>}]} {
    %c0 = arith.constant 0 : index
    %c0_0 = arith.constant 0 : index
    %0 = vector.load %arg1[%c0, %c0_0] : memref<8x1024xbf16, #tpu.memory_space<vmem>>, vector<8x1024xbf16>
    %c0_1 = arith.constant 0 : index
    %c0_2 = arith.constant 0 : index
    %1 = vector.load %arg2[%c0_1, %c0_2] : memref<1024x128xbf16, #tpu.memory_space<vmem>>, vector<1024x128xbf16>
    %cst = arith.constant dense<0.000000e+00> : vector<8x128xf32>
    %2 = tpu.matmul %0, %1, %cst {dimension_numbers = #tpu.dot_dimension_numbers<[1], [0], [0], [1], [0, 0, 1, 1], [], []>} : vector<8x1024xbf16>, vector<1024x128xbf16>, vector<8x128xf32> -> vector<8x128xf32>
    %c0_3 = arith.constant 0 : index
    %c0_4 = arith.constant 0 : index
    %3 = vector.load %arg5[%c0_3, %c0_4] : memref<8x128xf32, #tpu.memory_space<vmem>>, vector<1x128xf32>
    %4 = vector.broadcast %3 : vector<1x128xf32> to vector<8x128xf32>
    %5 = arith.addf %2, %4 : vector<8x128xf32>
    %cst_5 = arith.constant 0.000000e+00 : f32
    %6 = vector.broadcast %cst_5 : f32 to vector<8x128xf32>
    %7 = arith.maximumf %5, %6 : vector<8x128xf32>
    %8 = arith.truncf %7 : vector<8x128xf32> to vector<8x128xbf16>
    %c0_6 = arith.constant 0 : index
    %c0_7 = arith.constant 0 : index
    %c0_8 = arith.constant 0 : index
    %9 = vector.load %arg3[%c0_6, %c0_7, %c0_8] : memref<1x128x128xbf16, #tpu.memory_space<vmem>>, vector<1x128x128xbf16>
    %10 = vector.shape_cast %9 : vector<1x128x128xbf16> to vector<128x128xbf16>
    %cst_9 = arith.constant dense<0.000000e+00> : vector<8x128xf32>
    %11 = tpu.matmul %8, %10, %cst_9 {dimension_numbers = #tpu.dot_dimension_numbers<[1], [0], [0], [1], [0, 0, 1, 1], [], []>} : vector<8x128xbf16>, vector<128x128xbf16>, vector<8x128xf32> -> vector<8x128xf32>
    %c1 = arith.constant 1 : index
    %c0_10 = arith.constant 0 : index
    %12 = vector.load %arg5[%c1, %c0_10] : memref<8x128xf32, #tpu.memory_space<vmem>>, vector<1x128xf32>
    %13 = vector.broadcast %12 : vector<1x128xf32> to vector<8x128xf32>
    %14 = arith.addf %11, %13 : vector<8x128xf32>
    %cst_11 = arith.constant 0.000000e+00 : f32
    %15 = vector.broadcast %cst_11 : f32 to vector<8x128xf32>
    %16 = arith.maximumf %14, %15 : vector<8x128xf32>
    %17 = arith.truncf %16 : vector<8x128xf32> to vector<8x128xbf16>
    %c0_12 = arith.constant 0 : index
    %c0_13 = arith.constant 0 : index
    %18 = vector.load %arg4[%c0_12, %c0_13] : memref<128x128xbf16, #tpu.memory_space<vmem>>, vector<128x128xbf16>
    %cst_14 = arith.constant dense<0.000000e+00> : vector<8x128xf32>
    %19 = tpu.matmul %17, %18, %cst_14 {dimension_numbers = #tpu.dot_dimension_numbers<[1], [0], [0], [1], [0, 0, 1, 1], [], []>} : vector<8x128xbf16>, vector<128x128xbf16>, vector<8x128xf32> -> vector<8x128xf32>
    %c2 = arith.constant 2 : index
    %c0_15 = arith.constant 0 : index
    %20 = vector.load %arg5[%c2, %c0_15] : memref<8x128xf32, #tpu.memory_space<vmem>>, vector<1x128xf32>
    %21 = vector.broadcast %20 : vector<1x128xf32> to vector<8x128xf32>
    %22 = arith.addf %19, %21 : vector<8x128xf32>
    %c0_16 = arith.constant 0 : index
    %c0_17 = arith.constant 0 : index
    %23 = vector.load %arg6[%c0_16, %c0_17] : memref<8x128xf32, #tpu.memory_space<vmem>>, vector<8x128xf32>
    tpu.vector_store %arg6[%c0_16, %c0_17], %22 {strides = array<i32>} : memref<8x128xf32, #tpu.memory_space<vmem>>, vector<8x128xf32>,
    return
  }
  func.func @transform_0(%arg0: i32) -> (i32, i32) {
    %c0_i32 = arith.constant 0 : i32
    %c0_i32_0 = arith.constant 0 : i32
    return %arg0, %c0_i32 : i32, i32
  }
  func.func @transform_1(%arg0: i32) -> (i32, i32) {
    %c0_i32 = arith.constant 0 : i32
    %c0_i32_0 = arith.constant 0 : i32
    %c0_i32_1 = arith.constant 0 : i32
    return %c0_i32, %c0_i32_0 : i32, i32
  }
  func.func @transform_2(%arg0: i32) -> (i32, i32, i32) {
    %c0_i32 = arith.constant 0 : i32
    %c0_i32_0 = arith.constant 0 : i32
    %c0_i32_1 = arith.constant 0 : i32
    %c0_i32_2 = arith.constant 0 : i32
    return %c0_i32, %c0_i32_0, %c0_i32_1 : i32, i32, i32
  }
  func.func @transform_3(%arg0: i32) -> (i32, i32) {
    %c0_i32 = arith.constant 0 : i32
    %c0_i32_0 = arith.constant 0 : i32
    %c0_i32_1 = arith.constant 0 : i32
    return %c0_i32, %c0_i32_0 : i32, i32
  }
  func.func @transform_4(%arg0: i32) -> (i32, i32) {
    %c0_i32 = arith.constant 0 : i32
    %c0_i32_0 = arith.constant 0 : i32
    %c0_i32_1 = arith.constant 0 : i32
    return %c0_i32, %c0_i32_0 : i32, i32
  }
  func.func @transform_5(%arg0: i32) -> (i32, i32) {
    %c0_i32 = arith.constant 0 : i32
    %c0_i32_0 = arith.constant 0 : i32
    return %arg0, %c0_i32 : i32, i32
  }
}

</mosaic_0001>

<llo_original>
// kernel: tpu_custom_call.1
$region0: #{tpu_custom_call.1}
  #allocation0 [shape = 'u32[]', space=smem, size = 0x4, offset = 0x4, fixed_abs, tag = 'smem constant byte address 0x4 - core index']
  #allocation1 [shape = 'u32[72,128]{1,0:T(1,128)}', space=vmem, size = 0x9000, scoped, tag = 'internal scratch']
  %s0 = inlined_call_operand.hbm [shape: bf16[8,1024], index: 0, kind: input, shape index: {}]
  %s1 = inlined_call_operand.hbm [shape: bf16[1024,128], index: 1, kind: input, shape index: {}]
  %s2 = inlined_call_operand.hbm [shape: bf16[1,128,128], index: 2, kind: input, shape index: {}]
  %s3 = inlined_call_operand.hbm [shape: bf16[128,128], index: 3, kind: input, shape index: {}]
  %s4 = inlined_call_operand.hbm [shape: f32[8,128], index: 4, kind: input, shape index: {}]
  %s5 = inlined_call_operand.hbm [shape: f32[8,128], index: 5, kind: output, shape index: {}]
  %s6 = sld [smem:[#allocation0]]
  $region50: #{tpu_custom_call.1} parent=0
    _
  %s8 = ssub.s32 1, %s6
  %s9 = scalar_select 0, %s8, %s6
  $region1: #{tpu_custom_call.1} parent=0
    #allocation2 [shape = 'u8[16384]{0}', space=vmem, size = 0x4000, scoped, tag = 'input window, operand 0, single buffered']
    #allocation3 [shape = 's32[1]{0}', space=sflag, size = 0x4, scoped, tag = 'scoped memory for tpu_custom_call.1']
    #allocation4 [shape = 's32[1]{0}', space=sflag, size = 0x4, scoped, tag = 'scoped memory for tpu_custom_call.1']
    #allocation5 [shape = 'u8[262144]{0}', space=vmem, size = 0x40000, scoped, tag = 'input window, operand 1, single buffered']
    #allocation6 [shape = 's32[1]{0}', space=sflag, size = 0x4, scoped, tag = 'scoped memory for tpu_custom_call.1']
    #allocation7 [shape = 'u8[32768]{0}', space=vmem, size = 0x8000, scoped, tag = 'input window, operand 2, single buffered']
    #allocation8 [shape = 'u8[32768]{0}', space=vmem, size = 0x8000, scoped, tag = 'input window, operand 3, single buffered']
    #allocation9 [shape = 's32[1]{0}', space=sflag, size = 0x4, scoped, tag = 'scoped memory for tpu_custom_call.1']
    #allocation10 [shape = 'u8[4096]{0}', space=vmem, size = 0x1000, scoped, tag = 'input window, operand 4, single buffered']
    #allocation11 [shape = 'u8[4096]{0}', space=vmem, size = 0x1000, scoped, tag = 'output window, operand 0, single buffered']
    %10 = vsyncpa [#allocation3], 0
    %11 = vsyncpa [#allocation6], 0
    %12 = vsyncpa [#allocation9], 0
    %13 = vsyncpa [#allocation4], 0
    // Predicated region
    $region2: #{tpu_custom_call.1} parent=1 // pred_check
      _
    $region3: #{tpu_custom_call.1} parent=1 // pred_check_branch
      %15 = sbr.rel (0) target = $region5
    $region4: #{tpu_custom_call.1} parent=1 // pred_region
      %17 = vsyncadd [#allocation3], 0
      %s19 = sshll.u32 %s0, 4
      %s20 = int_to_ptr.hbm [resolvable:$true] %s19
      %s21 = sshll.u32 [#allocation2], 4
      %s22 = int_to_ptr.vmem [resolvable:$true] %s21
      %24 = dma.hbm_to_vmem [thread:$0]  %s20, 512, %s22, [#allocation3]
    $region5: #{tpu_custom_call.1} parent=1 // pred_fallthru
      _
    // Predicated region
    $region6: #{tpu_custom_call.1} parent=1 // pred_check
      _
    $region7: #{tpu_custom_call.1} parent=1 // pred_check_branch
      %26 = sbr.rel (0) target = $region9
    $region8: #{tpu_custom_call.1} parent=1 // pred_region
      %28 = vsyncadd [#allocation6], 0
      %s29 = sshll.u32 %s1, 4
      %s30 = int_to_ptr.hbm [resolvable:$true] %s29
      %s31 = sshll.u32 [#allocation5], 4
      %s32 = int_to_ptr.vmem [resolvable:$true] %s31
      %37 = dma.hbm_to_vmem [thread:$0]  %s30, 8192, %s32, [#allocation6], 64, 64, 4
    $region9: #{tpu_custom_call.1} parent=1 // pred_fallthru
      _
    // Predicated region
    $region10: #{tpu_custom_call.1} parent=1 // pred_check
      _
    $region11: #{tpu_custom_call.1} parent=1 // pred_check_branch
      %39 = sbr.rel (0) target = $region13
    $region12: #{tpu_custom_call.1} parent=1 // pred_region
      %41 = vsyncadd [#allocation6], 0
      %s42 = sshll.u32 %s2, 4
      %s43 = int_to_ptr.hbm [resolvable:$true] %s42
      %s44 = sshll.u32 [#allocation7], 4
      %s45 = int_to_ptr.vmem [resolvable:$true] %s44
      %50 = dma.hbm_to_vmem [thread:$0]  %s43, 1024, %s45, [#allocation6], 64, 64, 4
    $region13: #{tpu_custom_call.1} parent=1 // pred_fallthru
      _
    // Predicated region
    $region14: #{tpu_custom_call.1} parent=1 // pred_check
      _
    $region15: #{tpu_custom_call.1} parent=1 // pred_check_branch
      %52 = sbr.rel (0) target = $region17
    $region16: #{tpu_custom_call.1} parent=1 // pred_region
      %54 = vsyncadd [#allocation9], 0
      %s55 = sshll.u32 %s3, 4
      %s56 = int_to_ptr.hbm [resolvable:$true] %s55
      %s57 = sshll.u32 [#allocation8], 4
      %s58 = int_to_ptr.vmem [resolvable:$true] %s57
      %63 = dma.hbm_to_vmem [thread:$0]  %s56, 1024, %s58, [#allocation9], 64, 64, 4
    $region17: #{tpu_custom_call.1} parent=1 // pred_fallthru
      _
    // Predicated region
    $region18: #{tpu_custom_call.1} parent=1 // pred_check
      _
    $region19: #{tpu_custom_call.1} parent=1 // pred_check_branch
      %65 = sbr.rel (0) target = $region21
    $region20: #{tpu_custom_call.1} parent=1 // pred_region
      %67 = vsyncadd [#allocation9], 0
      %s69 = sshll.u32 %s4, 4
      %s70 = int_to_ptr.hbm [resolvable:$true] %s69
      %s71 = sshll.u32 [#allocation10], 4
      %s72 = int_to_ptr.vmem [resolvable:$true] %s71
      %74 = dma.hbm_to_vmem [thread:$0]  %s70, 128, %s72, [#allocation9]
    $region21: #{tpu_custom_call.1} parent=1 // pred_fallthru
      _
    // Predicated region
    $region22: #{tpu_custom_call.1} parent=1 // pred_check
      _
    $region23: #{tpu_custom_call.1} parent=1 // pred_check_branch
      %76 = sbr.rel (0) target = $region25
    $region24: #{tpu_custom_call.1} parent=1 // pred_region
      %78 = dma.done [#allocation3], 512
    $region25: #{tpu_custom_call.1} parent=1 // pred_fallthru
      _
    // Predicated region
    $region26: #{tpu_custom_call.1} parent=1 // pred_check
      _
    $region27: #{tpu_custom_call.1} parent=1 // pred_check_branch
      %80 = sbr.rel (0) target = $region29
    $region28: #{tpu_custom_call.1} parent=1 // pred_region
      %82 = dma.done [#allocation6], 8192
    $region29: #{tpu_custom_call.1} parent=1 // pred_fallthru
      _
    // Predicated region
    $region30: #{tpu_custom_call.1} parent=1 // pred_check
      _
    $region31: #{tpu_custom_call.1} parent=1 // pred_check_branch
      %84 = sbr.rel (0) target = $region33
    $region32: #{tpu_custom_call.1} parent=1 // pred_region
      %86 = dma.done [#allocation6], 1024
    $region33: #{tpu_custom_call.1} parent=1 // pred_fallthru
      _
    // Predicated region
    $region34: #{tpu_custom_call.1} parent=1 // pred_check
      _
    $region35: #{tpu_custom_call.1} parent=1 // pred_check_branch
      %88 = sbr.rel (0) target = $region37
    $region36: #{tpu_custom_call.1} parent=1 // pred_region
      %90 = dma.done [#allocation9], 1024
    $region37: #{tpu_custom_call.1} parent=1 // pred_fallthru
      _
    // Predicated region
    $region38: #{tpu_custom_call.1} parent=1 // pred_check
      _
    $region39: #{tpu_custom_call.1} parent=1 // pred_check_branch
      %92 = sbr.rel (0) target = $region41
    $region40: #{tpu_custom_call.1} parent=1 // pred_region
      %94 = dma.done [#allocation9], 128
    $region41: #{tpu_custom_call.1} parent=1 // pred_fallthru
      _
    %v95 = vld [vmem:[#allocation2] sm:$0xff]
    %v96 = vld [vmem:[#allocation2 + $0x8] sm:$0xff]
    %v97 = vld [vmem:[#allocation2 + $0x10] sm:$0xff]
    %v98 = vld [vmem:[#allocation2 + $0x18] sm:$0xff]
    %v99 = vld [vmem:[#allocation5] sm:$0xf]
    %v100 = vld [vmem:[#allocation5 + $0x4] sm:$0xf]
    %v101 = vld [vmem:[#allocation5 + $0x8] sm:$0xf]
    %v102 = vld [vmem:[#allocation5 + $0xc] sm:$0xf]
    %v103 = vld [vmem:[#allocation5 + $0x10] sm:$0xf]
    %v104 = vld [vmem:[#allocation5 + $0x14] sm:$0xf]
    %v105 = vld [vmem:[#allocation5 + $0x18] sm:$0xf]
    %v106 = vld [vmem:[#allocation5 + $0x1c] sm:$0xf]
    %v107 = vld [vmem:[#allocation5 + $0x20] sm:$0xf]
    %v108 = vld [vmem:[#allocation5 + $0x24] sm:$0xf]
    %v109 = vld [vmem:[#allocation5 + $0x28] sm:$0xf]
    %v110 = vld [vmem:[#allocation5 + $0x2c] sm:$0xf]
    %v111 = vld [vmem:[#allocation5 + $0x30] sm:$0xf]
    %v112 = vld [vmem:[#allocation5 + $0x34] sm:$0xf]
    %v113 = vld [vmem:[#allocation5 + $0x38] sm:$0xf]
    %v114 = vld [vmem:[#allocation5 + $0x3c] sm:$0xf]
    %v115 = vld [vmem:[#allocation5 + $0x40] sm:$0xf]
    %v116 = vld [vmem:[#allocation5 + $0x44] sm:$0xf]
    %v117 = vld [vmem:[#allocation5 + $0x48] sm:$0xf]
    %v118 = vld [vmem:[#allocation5 + $0x4c] sm:$0xf]
    %v119 = vld [vmem:[#allocation5 + $0x50] sm:$0xf]
    %v120 = vld [vmem:[#allocation5 + $0x54] sm:$0xf]
    %v121 = vld [vmem:[#allocation5 + $0x58] sm:$0xf]
    %v122 = vld [vmem:[#allocation5 + $0x5c] sm:$0xf]
    %v123 = vld [vmem:[#allocation5 + $0x60] sm:$0xf]
    %v124 = vld [vmem:[#allocation5 + $0x64] sm:$0xf]
    %v125 = vld [vmem:[#allocation5 + $0x68] sm:$0xf]
    %v126 = vld [vmem:[#allocation5 + $0x6c] sm:$0xf]
    %v127 = vld [vmem:[#allocation5 + $0x70] sm:$0xf]
    %v128 = vld [vmem:[#allocation5 + $0x74] sm:$0xf]
    %v129 = vld [vmem:[#allocation5 + $0x78] sm:$0xf]
    %v130 = vld [vmem:[#allocation5 + $0x7c] sm:$0xf]
    %v131 = vld [vmem:[#allocation5 + $0x80] sm:$0xf]
    %v132 = vld [vmem:[#allocation5 + $0x84] sm:$0xf]
    %v133 = vld [vmem:[#allocation5 + $0x88] sm:$0xf]
    %v134 = vld [vmem:[#allocation5 + $0x8c] sm:$0xf]
    %v135 = vld [vmem:[#allocation5 + $0x90] sm:$0xf]
    %v136 = vld [vmem:[#allocation5 + $0x94] sm:$0xf]
    %v137 = vld [vmem:[#allocation5 + $0x98] sm:$0xf]
    %v138 = vld [vmem:[#allocation5 + $0x9c] sm:$0xf]
    %v139 = vld [vmem:[#allocation5 + $0xa0] sm:$0xf]
    %v140 = vld [vmem:[#allocation5 + $0xa4] sm:$0xf]
    %v141 = vld [vmem:[#allocation5 + $0xa8] sm:$0xf]
    %v142 = vld [vmem:[#allocation5 + $0xac] sm:$0xf]
    %v143 = vld [vmem:[#allocation5 + $0xb0] sm:$0xf]
    %v144 = vld [vmem:[#allocation5 + $0xb4] sm:$0xf]
    %v145 = vld [vmem:[#allocation5 + $0xb8] sm:$0xf]
    %v146 = vld [vmem:[#allocation5 + $0xbc] sm:$0xf]
    %v147 = vld [vmem:[#allocation5 + $0xc0] sm:$0xf]
    %v148 = vld [vmem:[#allocation5 + $0xc4] sm:$0xf]
    %v149 = vld [vmem:[#allocation5 + $0xc8] sm:$0xf]
    %v150 = vld [vmem:[#allocation5 + $0xcc] sm:$0xf]
    %v151 = vld [vmem:[#allocation5 + $0xd0] sm:$0xf]
    %v152 = vld [vmem:[#allocation5 + $0xd4] sm:$0xf]
    %v153 = vld [vmem:[#allocation5 + $0xd8] sm:$0xf]
    %v154 = vld [vmem:[#allocation5 + $0xdc] sm:$0xf]
    %v155 = vld [vmem:[#allocation5 + $0xe0] sm:$0xf]
    %v156 = vld [vmem:[#allocation5 + $0xe4] sm:$0xf]
    %v157 = vld [vmem:[#allocation5 + $0xe8] sm:$0xf]
    %v158 = vld [vmem:[#allocation5 + $0xec] sm:$0xf]
    %v159 = vld [vmem:[#allocation5 + $0xf0] sm:$0xf]
    %v160 = vld [vmem:[#allocation5 + $0xf4] sm:$0xf]
    %v161 = vld [vmem:[#allocation5 + $0xf8] sm:$0xf]
    %v162 = vld [vmem:[#allocation5 + $0xfc] sm:$0xf]
    %v163 = vld [vmem:[#allocation5 + $0x100] sm:$0xf]
    %v164 = vld [vmem:[#allocation5 + $0x104] sm:$0xf]
    %v165 = vld [vmem:[#allocation5 + $0x108] sm:$0xf]
    %v166 = vld [vmem:[#allocation5 + $0x10c] sm:$0xf]
    %v167 = vld [vmem:[#allocation5 + $0x110] sm:$0xf]
    %v168 = vld [vmem:[#allocation5 + $0x114] sm:$0xf]
    %v169 = vld [vmem:[#allocation5 + $0x118] sm:$0xf]
    %v170 = vld [vmem:[#allocation5 + $0x11c] sm:$0xf]
    %v171 = vld [vmem:[#allocation5 + $0x120] sm:$0xf]
    %v172 = vld [vmem:[#allocation5 + $0x124] sm:$0xf]
    %v173 = vld [vmem:[#allocation5 + $0x128] sm:$0xf]
    %v174 = vld [vmem:[#allocation5 + $0x12c] sm:$0xf]
    %v175 = vld [vmem:[#allocation5 + $0x130] sm:$0xf]
    %v176 = vld [vmem:[#allocation5 + $0x134] sm:$0xf]
    %v177 = vld [vmem:[#allocation5 + $0x138] sm:$0xf]
    %v178 = vld [vmem:[#allocation5 + $0x13c] sm:$0xf]
    %v179 = vld [vmem:[#allocation5 + $0x140] sm:$0xf]
    %v180 = vld [vmem:[#allocation5 + $0x144] sm:$0xf]
    %v181 = vld [vmem:[#allocation5 + $0x148] sm:$0xf]
    %v182 = vld [vmem:[#allocation5 + $0x14c] sm:$0xf]
    %v183 = vld [vmem:[#allocation5 + $0x150] sm:$0xf]
    %v184 = vld [vmem:[#allocation5 + $0x154] sm:$0xf]
    %v185 = vld [vmem:[#allocation5 + $0x158] sm:$0xf]
    %v186 = vld [vmem:[#allocation5 + $0x15c] sm:$0xf]
    %v187 = vld [vmem:[#allocation5 + $0x160] sm:$0xf]
    %v188 = vld [vmem:[#allocation5 + $0x164] sm:$0xf]
    %v189 = vld [vmem:[#allocation5 + $0x168] sm:$0xf]
    %v190 = vld [vmem:[#allocation5 + $0x16c] sm:$0xf]
    %v191 = vld [vmem:[#allocation5 + $0x170] sm:$0xf]
    %v192 = vld [vmem:[#allocation5 + $0x174] sm:$0xf]
    %v193 = vld [vmem:[#allocation5 + $0x178] sm:$0xf]
    %v194 = vld [vmem:[#allocation5 + $0x17c] sm:$0xf]
    %v195 = vld [vmem:[#allocation5 + $0x180] sm:$0xf]
    %v196 = vld [vmem:[#allocation5 + $0x184] sm:$0xf]
    %v197 = vld [vmem:[#allocation5 + $0x188] sm:$0xf]
    %v198 = vld [vmem:[#allocation5 + $0x18c] sm:$0xf]
    %v199 = vld [vmem:[#allocation5 + $0x190] sm:$0xf]
    %v200 = vld [vmem:[#allocation5 + $0x194] sm:$0xf]
    %v201 = vld [vmem:[#allocation5 + $0x198] sm:$0xf]
    %v202 = vld [vmem:[#allocation5 + $0x19c] sm:$0xf]
    %v203 = vld [vmem:[#allocation5 + $0x1a0] sm:$0xf]
    %v204 = vld [vmem:[#allocation5 + $0x1a4] sm:$0xf]
    %v205 = vld [vmem:[#allocation5 + $0x1a8] sm:$0xf]
    %v206 = vld [vmem:[#allocation5 + $0x1ac] sm:$0xf]
    %v207 = vld [vmem:[#allocation5 + $0x1b0] sm:$0xf]
    %v208 = vld [vmem:[#allocation5 + $0x1b4] sm:$0xf]
    %v209 = vld [vmem:[#allocation5 + $0x1b8] sm:$0xf]
    %v210 = vld [vmem:[#allocation5 + $0x1bc] sm:$0xf]
    %v211 = vld [vmem:[#allocation5 + $0x1c0] sm:$0xf]
    %v212 = vld [vmem:[#allocation5 + $0x1c4] sm:$0xf]
    %v213 = vld [vmem:[#allocation5 + $0x1c8] sm:$0xf]
    %v214 = vld [vmem:[#allocation5 + $0x1cc] sm:$0xf]
    %v215 = vld [vmem:[#allocation5 + $0x1d0] sm:$0xf]
    %v216 = vld [vmem:[#allocation5 + $0x1d4] sm:$0xf]
    %v217 = vld [vmem:[#allocation5 + $0x1d8] sm:$0xf]
    %v218 = vld [vmem:[#allocation5 + $0x1dc] sm:$0xf]
    %v219 = vld [vmem:[#allocation5 + $0x1e0] sm:$0xf]
    %v220 = vld [vmem:[#allocation5 + $0x1e4] sm:$0xf]
    %v221 = vld [vmem:[#allocation5 + $0x1e8] sm:$0xf]
    %v222 = vld [vmem:[#allocation5 + $0x1ec] sm:$0xf]
    %v223 = vld [vmem:[#allocation5 + $0x1f0] sm:$0xf]
    %v224 = vld [vmem:[#allocation5 + $0x1f4] sm:$0xf]
    %v225 = vld [vmem:[#allocation5 + $0x1f8] sm:$0xf]
    %v226 = vld [vmem:[#allocation5 + $0x1fc] sm:$0xf]
    %v227 = vld [vmem:[#allocation10] sm:$0x1]
    %v228 = vperm.slane %v227, 0
    %v233 = vunpack.c.l.b16 %v95
    %v234 = vunpack.c.h.b16 %v95
    %v235 = vunpack.c.l.b16 %v96
    %v236 = vunpack.c.h.b16 %v96
    %v237 = vunpack.c.l.b16 %v97
    %v238 = vunpack.c.h.b16 %v97
    %v239 = vunpack.c.l.b16 %v98
    %v240 = vunpack.c.h.b16 %v98
    %v241 = vpack.c.b16 %v233, %v233
    %v242 = vpack.c.b16 %v234, %v234
    %v243 = vpack.c.b16 %v235, %v235
    %v244 = vpack.c.b16 %v236, %v236
    %v245 = vpack.c.b16 %v237, %v237
    %v246 = vpack.c.b16 %v238, %v238
    %v247 = vpack.c.b16 %v239, %v239
    %v248 = vpack.c.b16 %v240, %v240
    %v385 = vunpack.c.l.b16 %v99
    %v386 = vunpack.c.l.b16 %v100
    %v387 = vunpack.c.l.b16 %v101
    %v388 = vunpack.c.l.b16 %v102
    %v389 = vunpack.c.l.b16 %v103
    %v390 = vunpack.c.l.b16 %v104
    %v391 = vunpack.c.l.b16 %v105
    %v392 = vunpack.c.l.b16 %v106
    %v393 = vunpack.c.l.b16 %v107
    %v394 = vunpack.c.l.b16 %v108
    %v395 = vunpack.c.l.b16 %v109
    %v396 = vunpack.c.l.b16 %v110
    %v397 = vunpack.c.l.b16 %v111
    %v398 = vunpack.c.l.b16 %v112
    %v399 = vunpack.c.l.b16 %v113
    %v400 = vunpack.c.l.b16 %v114
    %v401 = vunpack.c.l.b16 %v115
    %v402 = vunpack.c.l.b16 %v116
    %v403 = vunpack.c.l.b16 %v117
    %v404 = vunpack.c.l.b16 %v118
    %v405 = vunpack.c.l.b16 %v119
    %v406 = vunpack.c.l.b16 %v120
    %v407 = vunpack.c.l.b16 %v121
    %v408 = vunpack.c.l.b16 %v122
    %v409 = vunpack.c.l.b16 %v123
    %v410 = vunpack.c.l.b16 %v124
    %v411 = vunpack.c.l.b16 %v125
    %v412 = vunpack.c.l.b16 %v126
    %v413 = vunpack.c.l.b16 %v127
    %v414 = vunpack.c.l.b16 %v128
    %v415 = vunpack.c.l.b16 %v129
    %v416 = vunpack.c.l.b16 %v130
    %v417 = vunpack.c.l.b16 %v131
    %v418 = vunpack.c.l.b16 %v132
    %v419 = vunpack.c.l.b16 %v133
    %v420 = vunpack.c.l.b16 %v134
    %v421 = vunpack.c.l.b16 %v135
    %v422 = vunpack.c.l.b16 %v136
    %v423 = vunpack.c.l.b16 %v137
    %v424 = vunpack.c.l.b16 %v138
    %v425 = vunpack.c.l.b16 %v139
    %v426 = vunpack.c.l.b16 %v140
    %v427 = vunpack.c.l.b16 %v141
    %v428 = vunpack.c.l.b16 %v142
    %v429 = vunpack.c.l.b16 %v143
    %v430 = vunpack.c.l.b16 %v144
    %v431 = vunpack.c.l.b16 %v145
    %v432 = vunpack.c.l.b16 %v146
    %v433 = vunpack.c.l.b16 %v147
    %v434 = vunpack.c.l.b16 %v148
    %v435 = vunpack.c.l.b16 %v149
    %v436 = vunpack.c.l.b16 %v150
    %v437 = vunpack.c.l.b16 %v151
    %v438 = vunpack.c.l.b16 %v152
    %v439 = vunpack.c.l.b16 %v153
    %v440 = vunpack.c.l.b16 %v154
    %v441 = vunpack.c.l.b16 %v155
    %v442 = vunpack.c.l.b16 %v156
    %v443 = vunpack.c.l.b16 %v157
    %v444 = vunpack.c.l.b16 %v158
    %v445 = vunpack.c.l.b16 %v159
    %v446 = vunpack.c.l.b16 %v160
    %v447 = vunpack.c.l.b16 %v161
    %v448 = vunpack.c.l.b16 %v162
    %v449 = vunpack.c.l.b16 %v163
    %v450 = vunpack.c.l.b16 %v164
    %v451 = vunpack.c.l.b16 %v165
    %v452 = vunpack.c.l.b16 %v166
    %v453 = vunpack.c.l.b16 %v167
    %v454 = vunpack.c.l.b16 %v168
    %v455 = vunpack.c.l.b16 %v169
    %v456 = vunpack.c.l.b16 %v170
    %v457 = vunpack.c.l.b16 %v171
    %v458 = vunpack.c.l.b16 %v172
    %v459 = vunpack.c.l.b16 %v173
    %v460 = vunpack.c.l.b16 %v174
    %v461 = vunpack.c.l.b16 %v175
    %v462 = vunpack.c.l.b16 %v176
    %v463 = vunpack.c.l.b16 %v177
    %v464 = vunpack.c.l.b16 %v178
    %v465 = vunpack.c.l.b16 %v179
    %v466 = vunpack.c.l.b16 %v180
    %v467 = vunpack.c.l.b16 %v181
    %v468 = vunpack.c.l.b16 %v182
    %v469 = vunpack.c.l.b16 %v183
    %v470 = vunpack.c.l.b16 %v184
    %v471 = vunpack.c.l.b16 %v185
    %v472 = vunpack.c.l.b16 %v186
    %v473 = vunpack.c.l.b16 %v187
    %v474 = vunpack.c.l.b16 %v188
    %v475 = vunpack.c.l.b16 %v189
    %v476 = vunpack.c.l.b16 %v190
    %v477 = vunpack.c.l.b16 %v191
    %v478 = vunpack.c.l.b16 %v192
    %v479 = vunpack.c.l.b16 %v193
    %v480 = vunpack.c.l.b16 %v194
    %v481 = vunpack.c.l.b16 %v195
    %v482 = vunpack.c.l.b16 %v196
    %v483 = vunpack.c.l.b16 %v197
    %v484 = vunpack.c.l.b16 %v198
    %v485 = vunpack.c.l.b16 %v199
    %v486 = vunpack.c.l.b16 %v200
    %v487 = vunpack.c.l.b16 %v201
    %v488 = vunpack.c.l.b16 %v202
    %v489 = vunpack.c.l.b16 %v203
    %v490 = vunpack.c.l.b16 %v204
    %v491 = vunpack.c.l.b16 %v205
    %v492 = vunpack.c.l.b16 %v206
    %v493 = vunpack.c.l.b16 %v207
    %v494 = vunpack.c.l.b16 %v208
    %v495 = vunpack.c.l.b16 %v209
    %v496 = vunpack.c.l.b16 %v210
    %v497 = vunpack.c.l.b16 %v211
    %v498 = vunpack.c.l.b16 %v212
    %v499 = vunpack.c.l.b16 %v213
    %v500 = vunpack.c.l.b16 %v214
    %v501 = vunpack.c.l.b16 %v215
    %v502 = vunpack.c.l.b16 %v216
    %v503 = vunpack.c.l.b16 %v217
    %v504 = vunpack.c.l.b16 %v218
    %v505 = vunpack.c.l.b16 %v219
    %v506 = vunpack.c.l.b16 %v220
    %v507 = vunpack.c.l.b16 %v221
    %v508 = vunpack.c.l.b16 %v222
    %v509 = vunpack.c.l.b16 %v223
    %v510 = vunpack.c.l.b16 %v224
    %v511 = vunpack.c.l.b16 %v225
    %v512 = vunpack.c.l.b16 %v226
    %v513 = vpack.c.b16 %v386, %v385
    %v514 = vpack.c.b16 %v388, %v387
    %v515 = vpack.c.b16 %v390, %v389
    %v516 = vpack.c.b16 %v392, %v391
    %v517 = vpack.c.b16 %v394, %v393
    %v518 = vpack.c.b16 %v396, %v395
    %v519 = vpack.c.b16 %v398, %v397
    %v520 = vpack.c.b16 %v400, %v399
    %v521 = vpack.c.b16 %v402, %v401
    %v522 = vpack.c.b16 %v404, %v403
    %v523 = vpack.c.b16 %v406, %v405
    %v524 = vpack.c.b16 %v408, %v407
    %v525 = vpack.c.b16 %v410, %v409
    %v526 = vpack.c.b16 %v412, %v411
    %v527 = vpack.c.b16 %v414, %v413
    %v528 = vpack.c.b16 %v416, %v415
    %v529 = vpack.c.b16 %v418, %v417
    %v530 = vpack.c.b16 %v420, %v419
    %v531 = vpack.c.b16 %v422, %v421
    %v532 = vpack.c.b16 %v424, %v423
    %v533 = vpack.c.b16 %v426, %v425
    %v534 = vpack.c.b16 %v428, %v427
    %v535 = vpack.c.b16 %v430, %v429
    %v536 = vpack.c.b16 %v432, %v431
    %v537 = vpack.c.b16 %v434, %v433
    %v538 = vpack.c.b16 %v436, %v435
    %v539 = vpack.c.b16 %v438, %v437
    %v540 = vpack.c.b16 %v440, %v439
    %v541 = vpack.c.b16 %v442, %v441
    %v542 = vpack.c.b16 %v444, %v443
    %v543 = vpack.c.b16 %v446, %v445
    %v544 = vpack.c.b16 %v448, %v447
    %v545 = vpack.c.b16 %v450, %v449
    %v546 = vpack.c.b16 %v452, %v451
    %v547 = vpack.c.b16 %v454, %v453
    %v548 = vpack.c.b16 %v456, %v455
    %v549 = vpack.c.b16 %v458, %v457
    %v550 = vpack.c.b16 %v460, %v459
    %v551 = vpack.c.b16 %v462, %v461
    %v552 = vpack.c.b16 %v464, %v463
    %v553 = vpack.c.b16 %v466, %v465
    %v554 = vpack.c.b16 %v468, %v467
    %v555 = vpack.c.b16 %v470, %v469
    %v556 = vpack.c.b16 %v472, %v471
    %v557 = vpack.c.b16 %v474, %v473
    %v558 = vpack.c.b16 %v476, %v475
    %v559 = vpack.c.b16 %v478, %v477
    %v560 = vpack.c.b16 %v480, %v479
    %v561 = vpack.c.b16 %v482, %v481
    %v562 = vpack.c.b16 %v484, %v483
    %v563 = vpack.c.b16 %v486, %v485
    %v564 = vpack.c.b16 %v488, %v487
    %v565 = vpack.c.b16 %v490, %v489
    %v566 = vpack.c.b16 %v492, %v491
    %v567 = vpack.c.b16 %v494, %v493
    %v568 = vpack.c.b16 %v496, %v495
    %v569 = vpack.c.b16 %v498, %v497
    %v570 = vpack.c.b16 %v500, %v499
    %v571 = vpack.c.b16 %v502, %v501
    %v572 = vpack.c.b16 %v504, %v503
    %v573 = vpack.c.b16 %v506, %v505
    %v574 = vpack.c.b16 %v508, %v507
    %v575 = vpack.c.b16 %v510, %v509
    %v576 = vpack.c.b16 %v512, %v511
    %641 = vmatpush.bf16.msra.mxu0 %v520
    %642 = vmatpush.bf16.msra.mxu0 %v519
    %643 = vmatpush.bf16.msra.mxu0 %v518
    %644 = vmatpush.bf16.msra.mxu0 %v517
    %645 = vmatpush.bf16.msra.mxu0 %v516
    %646 = vmatpush.bf16.msra.mxu0 %v515
    %647 = vmatpush.bf16.msra.mxu0 %v514
    %648 = vmatpush.bf16.msra.mxu0 %v513
    %649 = vmatmul.bf16.gmra.mxu0 %v241
    %v650 = vpop.f32.mrf.mxu0
    %v651 = vadd.f32 %v228, %v650
    %v652 = vpop.f32.mrf.mxu0
    %653 = vdwg.mxu0
    %654 = vmatpush.bf16.msra.mxu0 %v528
    %655 = vmatpush.bf16.msra.mxu0 %v527
    %656 = vmatpush.bf16.msra.mxu0 %v526
    %657 = vmatpush.bf16.msra.mxu0 %v525
    %658 = vmatpush.bf16.msra.mxu0 %v524
    %659 = vmatpush.bf16.msra.mxu0 %v523
    %660 = vmatpush.bf16.msra.mxu0 %v522
    %661 = vmatpush.bf16.msra.mxu0 %v521
    %662 = vmatmul.bf16.gmra.mxu0 %v242
    %v663 = vpop.f32.mrf.mxu0
    %v664 = vadd.f32 %v651, %v663
    %v665 = vpop.f32.mrf.mxu0
    %666 = vdwg.mxu0
    %667 = vmatpush.bf16.msra.mxu0 %v536
    %668 = vmatpush.bf16.msra.mxu0 %v535
    %669 = vmatpush.bf16.msra.mxu0 %v534
    %670 = vmatpush.bf16.msra.mxu0 %v533
    %671 = vmatpush.bf16.msra.mxu0 %v532
    %672 = vmatpush.bf16.msra.mxu0 %v531
    %673 = vmatpush.bf16.msra.mxu0 %v530
    %674 = vmatpush.bf16.msra.mxu0 %v529
    %675 = vmatmul.bf16.gmra.mxu0 %v243
    %v676 = vpop.f32.mrf.mxu0
    %v677 = vadd.f32 %v664, %v676
    %v678 = vpop.f32.mrf.mxu0
    %679 = vdwg.mxu0
    %680 = vmatpush.bf16.msra.mxu0 %v544
    %681 = vmatpush.bf16.msra.mxu0 %v543
    %682 = vmatpush.bf16.msra.mxu0 %v542
    %683 = vmatpush.bf16.msra.mxu0 %v541
    %684 = vmatpush.bf16.msra.mxu0 %v540
    %685 = vmatpush.bf16.msra.mxu0 %v539
    %686 = vmatpush.bf16.msra.mxu0 %v538
    %687 = vmatpush.bf16.msra.mxu0 %v537
    %688 = vmatmul.bf16.gmra.mxu0 %v244
    %v689 = vpop.f32.mrf.mxu0
    %v690 = vadd.f32 %v677, %v689
    %v691 = vpop.f32.mrf.mxu0
    %692 = vdwg.mxu0
    %693 = vmatpush.bf16.msra.mxu0 %v552
    %694 = vmatpush.bf16.msra.mxu0 %v551
    %695 = vmatpush.bf16.msra.mxu0 %v550
    %696 = vmatpush.bf16.msra.mxu0 %v549
    %697 = vmatpush.bf16.msra.mxu0 %v548
    %698 = vmatpush.bf16.msra.mxu0 %v547
    %699 = vmatpush.bf16.msra.mxu0 %v546
    %700 = vmatpush.bf16.msra.mxu0 %v545
    %701 = vmatmul.bf16.gmra.mxu0 %v245
    %v702 = vpop.f32.mrf.mxu0
    %v703 = vadd.f32 %v690, %v702
    %v704 = vpop.f32.mrf.mxu0
    %705 = vdwg.mxu0
    %706 = vmatpush.bf16.msra.mxu0 %v560
    %707 = vmatpush.bf16.msra.mxu0 %v559
    %708 = vmatpush.bf16.msra.mxu0 %v558
    %709 = vmatpush.bf16.msra.mxu0 %v557
    %710 = vmatpush.bf16.msra.mxu0 %v556
    %711 = vmatpush.bf16.msra.mxu0 %v555
    %712 = vmatpush.bf16.msra.mxu0 %v554
    %713 = vmatpush.bf16.msra.mxu0 %v553
    %714 = vmatmul.bf16.gmra.mxu0 %v246
    %v715 = vpop.f32.mrf.mxu0
    %v716 = vadd.f32 %v703, %v715
    %v717 = vpop.f32.mrf.mxu0
    %718 = vdwg.mxu0
    %719 = vmatpush.bf16.msra.mxu0 %v568
    %720 = vmatpush.bf16.msra.mxu0 %v567
    %721 = vmatpush.bf16.msra.mxu0 %v566
    %722 = vmatpush.bf16.msra.mxu0 %v565
    %723 = vmatpush.bf16.msra.mxu0 %v564
    %724 = vmatpush.bf16.msra.mxu0 %v563
    %725 = vmatpush.bf16.msra.mxu0 %v562
    %726 = vmatpush.bf16.msra.mxu0 %v561
    %727 = vmatmul.bf16.gmra.mxu0 %v247
    %v728 = vpop.f32.mrf.mxu0
    %v729 = vadd.f32 %v716, %v728
    %v730 = vpop.f32.mrf.mxu0
    %731 = vdwg.mxu0
    %732 = vmatpush.bf16.msra.mxu0 %v576
    %733 = vmatpush.bf16.msra.mxu0 %v575
    %734 = vmatpush.bf16.msra.mxu0 %v574
    %735 = vmatpush.bf16.msra.mxu0 %v573
    %736 = vmatpush.bf16.msra.mxu0 %v572
    %737 = vmatpush.bf16.msra.mxu0 %v571
    %738 = vmatpush.bf16.msra.mxu0 %v570
    %739 = vmatpush.bf16.msra.mxu0 %v569
    %740 = vmatmul.bf16.gmra.mxu0 %v248
    %v741 = vpop.f32.mrf.mxu0
    %v742 = vadd.f32 %v729, %v741
    %v743 = vpop.f32.mrf.mxu0
    %744 = vdwg.mxu0
    %v745 = vmax.f32 %v742, 0.0
    %v746 = vpack.c.bf16 %v745, %v745
    %v747 = vld [vmem:[#allocation7] sm:$0xf]
    %v748 = vld [vmem:[#allocation7 + $0x4] sm:$0xf]
    %v749 = vld [vmem:[#allocation7 + $0x8] sm:$0xf]
    %v750 = vld [vmem:[#allocation7 + $0xc] sm:$0xf]
    %v751 = vld [vmem:[#allocation7 + $0x10] sm:$0xf]
    %v752 = vld [vmem:[#allocation7 + $0x14] sm:$0xf]
    %v753 = vld [vmem:[#allocation7 + $0x18] sm:$0xf]
    %v754 = vld [vmem:[#allocation7 + $0x1c] sm:$0xf]
    %v755 = vld [vmem:[#allocation7 + $0x20] sm:$0xf]
    %v756 = vld [vmem:[#allocation7 + $0x24] sm:$0xf]
    %v757 = vld [vmem:[#allocation7 + $0x28] sm:$0xf]
    %v758 = vld [vmem:[#allocation7 + $0x2c] sm:$0xf]
    %v759 = vld [vmem:[#allocation7 + $0x30] sm:$0xf]
    %v760 = vld [vmem:[#allocation7 + $0x34] sm:$0xf]
    %v761 = vld [vmem:[#allocation7 + $0x38] sm:$0xf]
    %v762 = vld [vmem:[#allocation7 + $0x3c] sm:$0xf]
    %v763 = vld [vmem:[#allocation10 + $0x1] sm:$0x1]
    %v764 = vperm.slane %v763, 0
    %v781 = vunpack.c.l.b16 %v747
    %v782 = vunpack.c.l.b16 %v748
    %v783 = vunpack.c.l.b16 %v749
    %v784 = vunpack.c.l.b16 %v750
    %v785 = vunpack.c.l.b16 %v751
    %v786 = vunpack.c.l.b16 %v752
    %v787 = vunpack.c.l.b16 %v753
    %v788 = vunpack.c.l.b16 %v754
    %v789 = vunpack.c.l.b16 %v755
    %v790 = vunpack.c.l.b16 %v756
    %v791 = vunpack.c.l.b16 %v757
    %v792 = vunpack.c.l.b16 %v758
    %v793 = vunpack.c.l.b16 %v759
    %v794 = vunpack.c.l.b16 %v760
    %v795 = vunpack.c.l.b16 %v761
    %v796 = vunpack.c.l.b16 %v762
    %v797 = vpack.c.b16 %v782, %v781
    %v798 = vpack.c.b16 %v784, %v783
    %v799 = vpack.c.b16 %v786, %v785
    %v800 = vpack.c.b16 %v788, %v787
    %v801 = vpack.c.b16 %v790, %v789
    %v802 = vpack.c.b16 %v792, %v791
    %v803 = vpack.c.b16 %v794, %v793
    %v804 = vpack.c.b16 %v796, %v795
    %813 = vmatpush.bf16.msra.mxu0 %v804
    %814 = vmatpush.bf16.msra.mxu0 %v803
    %815 = vmatpush.bf16.msra.mxu0 %v802
    %816 = vmatpush.bf16.msra.mxu0 %v801
    %817 = vmatpush.bf16.msra.mxu0 %v800
    %818 = vmatpush.bf16.msra.mxu0 %v799
    %819 = vmatpush.bf16.msra.mxu0 %v798
    %820 = vmatpush.bf16.msra.mxu0 %v797
    %821 = vmatmul.bf16.gmra.mxu0 %v746
    %v822 = vpop.f32.mrf.mxu0
    %v823 = vadd.f32 %v764, %v822
    %v824 = vpop.f32.mrf.mxu0
    %825 = vdwg.mxu0
    %v826 = vmax.f32 %v823, 0.0
    %v827 = vpack.c.bf16 %v826, %v826
    %v828 = vld [vmem:[#allocation8] sm:$0xf]
    %v829 = vld [vmem:[#allocation8 + $0x4] sm:$0xf]
    %v830 = vld [vmem:[#allocation8 + $0x8] sm:$0xf]
    %v831 = vld [vmem:[#allocation8 + $0xc] sm:$0xf]
    %v832 = vld [vmem:[#allocation8 + $0x10] sm:$0xf]
    %v833 = vld [vmem:[#allocation8 + $0x14] sm:$0xf]
    %v834 = vld [vmem:[#allocation8 + $0x18] sm:$0xf]
    %v835 = vld [vmem:[#allocation8 + $0x1c] sm:$0xf]
    %v836 = vld [vmem:[#allocation8 + $0x20] sm:$0xf]
    %v837 = vld [vmem:[#allocation8 + $0x24] sm:$0xf]
    %v838 = vld [vmem:[#allocation8 + $0x28] sm:$0xf]
    %v839 = vld [vmem:[#allocation8 + $0x2c] sm:$0xf]
    %v840 = vld [vmem:[#allocation8 + $0x30] sm:$0xf]
    %v841 = vld [vmem:[#allocation8 + $0x34] sm:$0xf]
    %v842 = vld [vmem:[#allocation8 + $0x38] sm:$0xf]
    %v843 = vld [vmem:[#allocation8 + $0x3c] sm:$0xf]
    %v844 = vld [vmem:[#allocation10 + $0x2] sm:$0x1]
    %v845 = vperm.slane %v844, 0
    %v862 = vunpack.c.l.b16 %v828
    %v863 = vunpack.c.l.b16 %v829
    %v864 = vunpack.c.l.b16 %v830
    %v865 = vunpack.c.l.b16 %v831
    %v866 = vunpack.c.l.b16 %v832
    %v867 = vunpack.c.l.b16 %v833
    %v868 = vunpack.c.l.b16 %v834
    %v869 = vunpack.c.l.b16 %v835
    %v870 = vunpack.c.l.b16 %v836
    %v871 = vunpack.c.l.b16 %v837
    %v872 = vunpack.c.l.b16 %v838
    %v873 = vunpack.c.l.b16 %v839
    %v874 = vunpack.c.l.b16 %v840
    %v875 = vunpack.c.l.b16 %v841
    %v876 = vunpack.c.l.b16 %v842
    %v877 = vunpack.c.l.b16 %v843
    %v878 = vpack.c.b16 %v863, %v862
    %v879 = vpack.c.b16 %v865, %v864
    %v880 = vpack.c.b16 %v867, %v866
    %v881 = vpack.c.b16 %v869, %v868
    %v882 = vpack.c.b16 %v871, %v870
    %v883 = vpack.c.b16 %v873, %v872
    %v884 = vpack.c.b16 %v875, %v874
    %v885 = vpack.c.b16 %v877, %v876
    %894 = vmatpush.bf16.msra.mxu0 %v885
    %895 = vmatpush.bf16.msra.mxu0 %v884
    %896 = vmatpush.bf16.msra.mxu0 %v883
    %897 = vmatpush.bf16.msra.mxu0 %v882
    %898 = vmatpush.bf16.msra.mxu0 %v881
    %899 = vmatpush.bf16.msra.mxu0 %v880
    %900 = vmatpush.bf16.msra.mxu0 %v879
    %901 = vmatpush.bf16.msra.mxu0 %v878
    %902 = vmatmul.bf16.gmra.mxu0 %v827
    %v903 = vpop.f32.mrf.mxu0
    %v904 = vadd.f32 %v845, %v903
    %v905 = vpop.f32.mrf.mxu0
    %906 = vdwg.mxu0
    %907 = vst [vmem:[#allocation11] sm:$0xff] %v904
    // Predicated region
    $region42: #{tpu_custom_call.1} parent=1 // pred_check
      _
    $region43: #{tpu_custom_call.1} parent=1 // pred_check_branch
      %909 = sbr.rel (0) target = $region45
    $region44: #{tpu_custom_call.1} parent=1 // pred_region
      %911 = vsyncadd [#allocation4], 0
      %s913 = sshll.u32 [#allocation11], 4
      %s914 = int_to_ptr.vmem [resolvable:$true] %s913
      %s915 = sshll.u32 %s5, 4
      %s916 = int_to_ptr.hbm [resolvable:$true] %s915
      %918 = dma.vmem_to_hbm [thread:$0]  %s914, 128, %s916, [#allocation4]
    $region45: #{tpu_custom_call.1} parent=1 // pred_fallthru
      _
    // Predicated region
    $region46: #{tpu_custom_call.1} parent=1 // pred_check
      _
    $region47: #{tpu_custom_call.1} parent=1 // pred_check_branch
      %920 = sbr.rel (0) target = $region49
    $region48: #{tpu_custom_call.1} parent=1 // pred_region
      %922 = dma.done [#allocation4], 128
    $region49: #{tpu_custom_call.1} parent=1 // pred_fallthru
      _
    %923 = vsyncpa [#allocation3], 1
    %924 = vsyncpa [#allocation6], 1
    %925 = vsyncpa [#allocation9], 1
    %926 = vsyncpa [#allocation4], 1

// kernel: tpu_custom_call.1
$region0: #{tpu_custom_call.1}
  #allocation0 [shape = 'u32[]', space=smem, size = 0x4, offset = 0x4, fixed_abs, tag = 'smem constant byte address 0x4 - core index']
  #allocation1 [shape = 'u32[72,128]{1,0:T(1,128)}', space=vmem, size = 0x9000, scoped, tag = 'internal scratch']
  %s0 = inlined_call_operand.hbm [shape: bf16[8,1024], index: 0, kind: input, shape index: {}]
  %s1 = inlined_call_operand.hbm [shape: bf16[1024,128], index: 1, kind: input, shape index: {}]
  %s2 = inlined_call_operand.hbm [shape: bf16[1,128,128], index: 2, kind: input, shape index: {}]
  %s3 = inlined_call_operand.hbm [shape: bf16[128,128], index: 3, kind: input, shape index: {}]
  %s4 = inlined_call_operand.hbm [shape: f32[8,128], index: 4, kind: input, shape index: {}]
  %s5 = inlined_call_operand.hbm [shape: f32[8,128], index: 5, kind: output, shape index: {}]
  %s6 = sld [smem:[#allocation0]]
  $region50: #{tpu_custom_call.1} parent=0
    _
  %s8 = ssub.s32 1, %s6
  %s9 = scalar_select 0, %s8, %s6
  $region1: #{tpu_custom_call.1} parent=0
    #allocation2 [shape = 'u8[16384]{0}', space=vmem, size = 0x4000, scoped, tag = 'input window, operand 0, single buffered']
    #allocation3 [shape = 's32[1]{0}', space=sflag, size = 0x4, scoped, tag = 'scoped memory for tpu_custom_call.1']
    #allocation4 [shape = 's32[1]{0}', space=sflag, size = 0x4, scoped, tag = 'scoped memory for tpu_custom_call.1']
    #allocation5 [shape = 'u8[262144]{0}', space=vmem, size = 0x40000, scoped, tag = 'input window, operand 1, single buffered']
    #allocation6 [shape = 's32[1]{0}', space=sflag, size = 0x4, scoped, tag = 'scoped memory for tpu_custom_call.1']
    #allocation7 [shape = 'u8[32768]{0}', space=vmem, size = 0x8000, scoped, tag = 'input window, operand 2, single buffered']
    #allocation8 [shape = 'u8[32768]{0}', space=vmem, size = 0x8000, scoped, tag = 'input window, operand 3, single buffered']
    #allocation9 [shape = 's32[1]{0}', space=sflag, size = 0x4, scoped, tag = 'scoped memory for tpu_custom_call.1']
    #allocation10 [shape = 'u8[4096]{0}', space=vmem, size = 0x1000, scoped, tag = 'input window, operand 4, single buffered']
    #allocation11 [shape = 'u8[4096]{0}', space=vmem, size = 0x1000, scoped, tag = 'output window, operand 0, single buffered']
    %10 = vsyncpa [#allocation3], 0
    %11 = vsyncpa [#allocation6], 0
    %12 = vsyncpa [#allocation9], 0
    %13 = vsyncpa [#allocation4], 0
    // Predicated region
    $region2: #{tpu_custom_call.1} parent=1 // pred_check
      _
    $region3: #{tpu_custom_call.1} parent=1 // pred_check_branch
      %15 = sbr.rel (0) target = $region5
    $region4: #{tpu_custom_call.1} parent=1 // pred_region
      %17 = vsyncadd [#allocation3], 0
      %s19 = sshll.u32 %s0, 4
      %s20 = int_to_ptr.hbm [resolvable:$true] %s19
      %s21 = sshll.u32 [#allocation2], 4
      %s22 = int_to_ptr.vmem [resolvable:$true] %s21
      %24 = dma.hbm_to_vmem [thread:$0]  %s20, 512, %s22, [#allocation3]
    $region5: #{tpu_custom_call.1} parent=1 // pred_fallthru
      _
    // Predicated region
    $region6: #{tpu_custom_call.1} parent=1 // pred_check
      _
    $region7: #{tpu_custom_call.1} parent=1 // pred_check_branch
      %26 = sbr.rel (0) target = $region9
    $region8: #{tpu_custom_call.1} parent=1 // pred_region
      %28 = vsyncadd [#allocation6], 0
      %s29 = sshll.u32 %s1, 4
      %s30 = int_to_ptr.hbm [resolvable:$true] %s29
      %s31 = sshll.u32 [#allocation5], 4
      %s32 = int_to_ptr.vmem [resolvable:$true] %s31
      %37 = dma.hbm_to_vmem [thread:$0]  %s30, 8192, %s32, [#allocation6], 64, 64, 4
    $region9: #{tpu_custom_call.1} parent=1 // pred_fallthru
      _
    // Predicated region
    $region10: #{tpu_custom_call.1} parent=1 // pred_check
      _
    $region11: #{tpu_custom_call.1} parent=1 // pred_check_branch
      %39 = sbr.rel (0) target = $region13
    $region12: #{tpu_custom_call.1} parent=1 // pred_region
      %41 = vsyncadd [#allocation6], 0
      %s42 = sshll.u32 %s2, 4
      %s43 = int_to_ptr.hbm [resolvable:$true] %s42
      %s44 = sshll.u32 [#allocation7], 4
      %s45 = int_to_ptr.vmem [resolvable:$true] %s44
      %50 = dma.hbm_to_vmem [thread:$0]  %s43, 1024, %s45, [#allocation6], 64, 64, 4
    $region13: #{tpu_custom_call.1} parent=1 // pred_fallthru
      _
    // Predicated region
    $region14: #{tpu_custom_call.1} parent=1 // pred_check
      _
    $region15: #{tpu_custom_call.1} parent=1 // pred_check_branch
      %52 = sbr.rel (0) target = $region17
    $region16: #{tpu_custom_call.1} parent=1 // pred_region
      %54 = vsyncadd [#allocation9], 0
      %s55 = sshll.u32 %s3, 4
      %s56 = int_to_ptr.hbm [resolvable:$true] %s55
      %s57 = sshll.u32 [#allocation8], 4
      %s58 = int_to_ptr.vmem [resolvable:$true] %s57
      %63 = dma.hbm_to_vmem [thread:$0]  %s56, 1024, %s58, [#allocation9], 64, 64, 4
    $region17: #{tpu_custom_call.1} parent=1 // pred_fallthru
      _
    // Predicated region
    $region18: #{tpu_custom_call.1} parent=1 // pred_check
      _
    $region19: #{tpu_custom_call.1} parent=1 // pred_check_branch
      %65 = sbr.rel (0) target = $region21
    $region20: #{tpu_custom_call.1} parent=1 // pred_region
      %67 = vsyncadd [#allocation9], 0
      %s69 = sshll.u32 %s4, 4
      %s70 = int_to_ptr.hbm [resolvable:$true] %s69
      %s71 = sshll.u32 [#allocation10], 4
      %s72 = int_to_ptr.vmem [resolvable:$true] %s71
      %74 = dma.hbm_to_vmem [thread:$0]  %s70, 128, %s72, [#allocation9]
    $region21: #{tpu_custom_call.1} parent=1 // pred_fallthru
      _
    // Predicated region
    $region22: #{tpu_custom_call.1} parent=1 // pred_check
      _
    $region23: #{tpu_custom_call.1} parent=1 // pred_check_branch
      %76 = sbr.rel (0) target = $region25
    $region24: #{tpu_custom_call.1} parent=1 // pred_region
      %78 = dma.done [#allocation3], 512
    $region25: #{tpu_custom_call.1} parent=1 // pred_fallthru
      _
    // Predicated region
    $region26: #{tpu_custom_call.1} parent=1 // pred_check
      _
    $region27: #{tpu_custom_call.1} parent=1 // pred_check_branch
      %80 = sbr.rel (0) target = $region29
    $region28: #{tpu_custom_call.1} parent=1 // pred_region
      %82 = dma.done [#allocation6], 8192
    $region29: #{tpu_custom_call.1} parent=1 // pred_fallthru
      _
    // Predicated region
    $region30: #{tpu_custom_call.1} parent=1 // pred_check
      _
    $region31: #{tpu_custom_call.1} parent=1 // pred_check_branch
      %84 = sbr.rel (0) target = $region33
    $region32: #{tpu_custom_call.1} parent=1 // pred_region
      %86 = dma.done [#allocation6], 1024
    $region33: #{tpu_custom_call.1} parent=1 // pred_fallthru
      _
    // Predicated region
    $region34: #{tpu_custom_call.1} parent=1 // pred_check
      _
    $region35: #{tpu_custom_call.1} parent=1 // pred_check_branch
      %88 = sbr.rel (0) target = $region37
    $region36: #{tpu_custom_call.1} parent=1 // pred_region
      %90 = dma.done [#allocation9], 1024
    $region37: #{tpu_custom_call.1} parent=1 // pred_fallthru
      _
    // Predicated region
    $region38: #{tpu_custom_call.1} parent=1 // pred_check
      _
    $region39: #{tpu_custom_call.1} parent=1 // pred_check_branch
      %92 = sbr.rel (0) target = $region41
    $region40: #{tpu_custom_call.1} parent=1 // pred_region
      %94 = dma.done [#allocation9], 128
    $region41: #{tpu_custom_call.1} parent=1 // pred_fallthru
      _
    %v95 = vld [vmem:[#allocation2] sm:$0xff]
    %v96 = vld [vmem:[#allocation2 + $0x8] sm:$0xff]
    %v97 = vld [vmem:[#allocation2 + $0x10] sm:$0xff]
    %v98 = vld [vmem:[#allocation2 + $0x18] sm:$0xff]
    %v99 = vld [vmem:[#allocation5] sm:$0xf]
    %v100 = vld [vmem:[#allocation5 + $0x4] sm:$0xf]
    %v101 = vld [vmem:[#allocation5 + $0x8] sm:$0xf]
    %v102 = vld [vmem:[#allocation5 + $0xc] sm:$0xf]
    %v103 = vld [vmem:[#allocation5 + $0x10] sm:$0xf]
    %v104 = vld [vmem:[#allocation5 + $0x14] sm:$0xf]
    %v105 = vld [vmem:[#allocation5 + $0x18] sm:$0xf]
    %v106 = vld [vmem:[#allocation5 + $0x1c] sm:$0xf]
    %v107 = vld [vmem:[#allocation5 + $0x20] sm:$0xf]
    %v108 = vld [vmem:[#allocation5 + $0x24] sm:$0xf]
    %v109 = vld [vmem:[#allocation5 + $0x28] sm:$0xf]
    %v110 = vld [vmem:[#allocation5 + $0x2c] sm:$0xf]
    %v111 = vld [vmem:[#allocation5 + $0x30] sm:$0xf]
    %v112 = vld [vmem:[#allocation5 + $0x34] sm:$0xf]
    %v113 = vld [vmem:[#allocation5 + $0x38] sm:$0xf]
    %v114 = vld [vmem:[#allocation5 + $0x3c] sm:$0xf]
    %v115 = vld [vmem:[#allocation5 + $0x40] sm:$0xf]
    %v116 = vld [vmem:[#allocation5 + $0x44] sm:$0xf]
    %v117 = vld [vmem:[#allocation5 + $0x48] sm:$0xf]
    %v118 = vld [vmem:[#allocation5 + $0x4c] sm:$0xf]
    %v119 = vld [vmem:[#allocation5 + $0x50] sm:$0xf]
    %v120 = vld [vmem:[#allocation5 + $0x54] sm:$0xf]
    %v121 = vld [vmem:[#allocation5 + $0x58] sm:$0xf]
    %v122 = vld [vmem:[#allocation5 + $0x5c] sm:$0xf]
    %v123 = vld [vmem:[#allocation5 + $0x60] sm:$0xf]
    %v124 = vld [vmem:[#allocation5 + $0x64] sm:$0xf]
    %v125 = vld [vmem:[#allocation5 + $0x68] sm:$0xf]
    %v126 = vld [vmem:[#allocation5 + $0x6c] sm:$0xf]
    %v127 = vld [vmem:[#allocation5 + $0x70] sm:$0xf]
    %v128 = vld [vmem:[#allocation5 + $0x74] sm:$0xf]
    %v129 = vld [vmem:[#allocation5 + $0x78] sm:$0xf]
    %v130 = vld [vmem:[#allocation5 + $0x7c] sm:$0xf]
    %v131 = vld [vmem:[#allocation5 + $0x80] sm:$0xf]
    %v132 = vld [vmem:[#allocation5 + $0x84] sm:$0xf]
    %v133 = vld [vmem:[#allocation5 + $0x88] sm:$0xf]
    %v134 = vld [vmem:[#allocation5 + $0x8c] sm:$0xf]
    %v135 = vld [vmem:[#allocation5 + $0x90] sm:$0xf]
    %v136 = vld [vmem:[#allocation5 + $0x94] sm:$0xf]
    %v137 = vld [vmem:[#allocation5 + $0x98] sm:$0xf]
    %v138 = vld [vmem:[#allocation5 + $0x9c] sm:$0xf]
    %v139 = vld [vmem:[#allocation5 + $0xa0] sm:$0xf]
    %v140 = vld [vmem:[#allocation5 + $0xa4] sm:$0xf]
    %v141 = vld [vmem:[#allocation5 + $0xa8] sm:$0xf]
    %v142 = vld [vmem:[#allocation5 + $0xac] sm:$0xf]
    %v143 = vld [vmem:[#allocation5 + $0xb0] sm:$0xf]
    %v144 = vld [vmem:[#allocation5 + $0xb4] sm:$0xf]
    %v145 = vld [vmem:[#allocation5 + $0xb8] sm:$0xf]
    %v146 = vld [vmem:[#allocation5 + $0xbc] sm:$0xf]
    %v147 = vld [vmem:[#allocation5 + $0xc0] sm:$0xf]
    %v148 = vld [vmem:[#allocation5 + $0xc4] sm:$0xf]
    %v149 = vld [vmem:[#allocation5 + $0xc8] sm:$0xf]
    %v150 = vld [vmem:[#allocation5 + $0xcc] sm:$0xf]
    %v151 = vld [vmem:[#allocation5 + $0xd0] sm:$0xf]
    %v152 = vld [vmem:[#allocation5 + $0xd4] sm:$0xf]
    %v153 = vld [vmem:[#allocation5 + $0xd8] sm:$0xf]
    %v154 = vld [vmem:[#allocation5 + $0xdc] sm:$0xf]
    %v155 = vld [vmem:[#allocation5 + $0xe0] sm:$0xf]
    %v156 = vld [vmem:[#allocation5 + $0xe4] sm:$0xf]
    %v157 = vld [vmem:[#allocation5 + $0xe8] sm:$0xf]
    %v158 = vld [vmem:[#allocation5 + $0xec] sm:$0xf]
    %v159 = vld [vmem:[#allocation5 + $0xf0] sm:$0xf]
    %v160 = vld [vmem:[#allocation5 + $0xf4] sm:$0xf]
    %v161 = vld [vmem:[#allocation5 + $0xf8] sm:$0xf]
    %v162 = vld [vmem:[#allocation5 + $0xfc] sm:$0xf]
    %v163 = vld [vmem:[#allocation5 + $0x100] sm:$0xf]
    %v164 = vld [vmem:[#allocation5 + $0x104] sm:$0xf]
    %v165 = vld [vmem:[#allocation5 + $0x108] sm:$0xf]
    %v166 = vld [vmem:[#allocation5 + $0x10c] sm:$0xf]
    %v167 = vld [vmem:[#allocation5 + $0x110] sm:$0xf]
    %v168 = vld [vmem:[#allocation5 + $0x114] sm:$0xf]
    %v169 = vld [vmem:[#allocation5 + $0x118] sm:$0xf]
    %v170 = vld [vmem:[#allocation5 + $0x11c] sm:$0xf]
    %v171 = vld [vmem:[#allocation5 + $0x120] sm:$0xf]
    %v172 = vld [vmem:[#allocation5 + $0x124] sm:$0xf]
    %v173 = vld [vmem:[#allocation5 + $0x128] sm:$0xf]
    %v174 = vld [vmem:[#allocation5 + $0x12c] sm:$0xf]
    %v175 = vld [vmem:[#allocation5 + $0x130] sm:$0xf]
    %v176 = vld [vmem:[#allocation5 + $0x134] sm:$0xf]
    %v177 = vld [vmem:[#allocation5 + $0x138] sm:$0xf]
    %v178 = vld [vmem:[#allocation5 + $0x13c] sm:$0xf]
    %v179 = vld [vmem:[#allocation5 + $0x140] sm:$0xf]
    %v180 = vld [vmem:[#allocation5 + $0x144] sm:$0xf]
    %v181 = vld [vmem:[#allocation5 + $0x148] sm:$0xf]
    %v182 = vld [vmem:[#allocation5 + $0x14c] sm:$0xf]
    %v183 = vld [vmem:[#allocation5 + $0x150] sm:$0xf]
    %v184 = vld [vmem:[#allocation5 + $0x154] sm:$0xf]
    %v185 = vld [vmem:[#allocation5 + $0x158] sm:$0xf]
    %v186 = vld [vmem:[#allocation5 + $0x15c] sm:$0xf]
    %v187 = vld [vmem:[#allocation5 + $0x160] sm:$0xf]
    %v188 = vld [vmem:[#allocation5 + $0x164] sm:$0xf]
    %v189 = vld [vmem:[#allocation5 + $0x168] sm:$0xf]
    %v190 = vld [vmem:[#allocation5 + $0x16c] sm:$0xf]
    %v191 = vld [vmem:[#allocation5 + $0x170] sm:$0xf]
    %v192 = vld [vmem:[#allocation5 + $0x174] sm:$0xf]
    %v193 = vld [vmem:[#allocation5 + $0x178] sm:$0xf]
    %v194 = vld [vmem:[#allocation5 + $0x17c] sm:$0xf]
    %v195 = vld [vmem:[#allocation5 + $0x180] sm:$0xf]
    %v196 = vld [vmem:[#allocation5 + $0x184] sm:$0xf]
    %v197 = vld [vmem:[#allocation5 + $0x188] sm:$0xf]
    %v198 = vld [vmem:[#allocation5 + $0x18c] sm:$0xf]
    %v199 = vld [vmem:[#allocation5 + $0x190] sm:$0xf]
    %v200 = vld [vmem:[#allocation5 + $0x194] sm:$0xf]
    %v201 = vld [vmem:[#allocation5 + $0x198] sm:$0xf]
    %v202 = vld [vmem:[#allocation5 + $0x19c] sm:$0xf]
    %v203 = vld [vmem:[#allocation5 + $0x1a0] sm:$0xf]
    %v204 = vld [vmem:[#allocation5 + $0x1a4] sm:$0xf]
    %v205 = vld [vmem:[#allocation5 + $0x1a8] sm:$0xf]
    %v206 = vld [vmem:[#allocation5 + $0x1ac] sm:$0xf]
    %v207 = vld [vmem:[#allocation5 + $0x1b0] sm:$0xf]
    %v208 = vld [vmem:[#allocation5 + $0x1b4] sm:$0xf]
    %v209 = vld [vmem:[#allocation5 + $0x1b8] sm:$0xf]
    %v210 = vld [vmem:[#allocation5 + $0x1bc] sm:$0xf]
    %v211 = vld [vmem:[#allocation5 + $0x1c0] sm:$0xf]
    %v212 = vld [vmem:[#allocation5 + $0x1c4] sm:$0xf]
    %v213 = vld [vmem:[#allocation5 + $0x1c8] sm:$0xf]
    %v214 = vld [vmem:[#allocation5 + $0x1cc] sm:$0xf]
    %v215 = vld [vmem:[#allocation5 + $0x1d0] sm:$0xf]
    %v216 = vld [vmem:[#allocation5 + $0x1d4] sm:$0xf]
    %v217 = vld [vmem:[#allocation5 + $0x1d8] sm:$0xf]
    %v218 = vld [vmem:[#allocation5 + $0x1dc] sm:$0xf]
    %v219 = vld [vmem:[#allocation5 + $0x1e0] sm:$0xf]
    %v220 = vld [vmem:[#allocation5 + $0x1e4] sm:$0xf]
    %v221 = vld [vmem:[#allocation5 + $0x1e8] sm:$0xf]
    %v222 = vld [vmem:[#allocation5 + $0x1ec] sm:$0xf]
    %v223 = vld [vmem:[#allocation5 + $0x1f0] sm:$0xf]
    %v224 = vld [vmem:[#allocation5 + $0x1f4] sm:$0xf]
    %v225 = vld [vmem:[#allocation5 + $0x1f8] sm:$0xf]
    %v226 = vld [vmem:[#allocation5 + $0x1fc] sm:$0xf]
    %v227 = vld [vmem:[#allocation10] sm:$0x1]
    %v228 = vperm.slane %v227, 0
    %v233 = vunpack.c.l.b16 %v95
    %v234 = vunpack.c.h.b16 %v95
    %v235 = vunpack.c.l.b16 %v96
    %v236 = vunpack.c.h.b16 %v96
    %v237 = vunpack.c.l.b16 %v97
    %v238 = vunpack.c.h.b16 %v97
    %v239 = vunpack.c.l.b16 %v98
    %v240 = vunpack.c.h.b16 %v98
    %v241 = vpack.c.b16 %v233, %v233
    %v242 = vpack.c.b16 %v234, %v234
    %v243 = vpack.c.b16 %v235, %v235
    %v244 = vpack.c.b16 %v236, %v236
    %v245 = vpack.c.b16 %v237, %v237
    %v246 = vpack.c.b16 %v238, %v238
    %v247 = vpack.c.b16 %v239, %v239
    %v248 = vpack.c.b16 %v240, %v240
    %v385 = vunpack.c.l.b16 %v99
    %v386 = vunpack.c.l.b16 %v100
    %v387 = vunpack.c.l.b16 %v101
    %v388 = vunpack.c.l.b16 %v102
    %v389 = vunpack.c.l.b16 %v103
    %v390 = vunpack.c.l.b16 %v104
    %v391 = vunpack.c.l.b16 %v105
    %v392 = vunpack.c.l.b16 %v106
    %v393 = vunpack.c.l.b16 %v107
    %v394 = vunpack.c.l.b16 %v108
    %v395 = vunpack.c.l.b16 %v109
    %v396 = vunpack.c.l.b16 %v110
    %v397 = vunpack.c.l.b16 %v111
    %v398 = vunpack.c.l.b16 %v112
    %v399 = vunpack.c.l.b16 %v113
    %v400 = vunpack.c.l.b16 %v114
    %v401 = vunpack.c.l.b16 %v115
    %v402 = vunpack.c.l.b16 %v116
    %v403 = vunpack.c.l.b16 %v117
    %v404 = vunpack.c.l.b16 %v118
    %v405 = vunpack.c.l.b16 %v119
    %v406 = vunpack.c.l.b16 %v120
    %v407 = vunpack.c.l.b16 %v121
    %v408 = vunpack.c.l.b16 %v122
    %v409 = vunpack.c.l.b16 %v123
    %v410 = vunpack.c.l.b16 %v124
    %v411 = vunpack.c.l.b16 %v125
    %v412 = vunpack.c.l.b16 %v126
    %v413 = vunpack.c.l.b16 %v127
    %v414 = vunpack.c.l.b16 %v128
    %v415 = vunpack.c.l.b16 %v129
    %v416 = vunpack.c.l.b16 %v130
    %v417 = vunpack.c.l.b16 %v131
    %v418 = vunpack.c.l.b16 %v132
    %v419 = vunpack.c.l.b16 %v133
    %v420 = vunpack.c.l.b16 %v134
    %v421 = vunpack.c.l.b16 %v135
    %v422 = vunpack.c.l.b16 %v136
    %v423 = vunpack.c.l.b16 %v137
    %v424 = vunpack.c.l.b16 %v138
    %v425 = vunpack.c.l.b16 %v139
    %v426 = vunpack.c.l.b16 %v140
    %v427 = vunpack.c.l.b16 %v141
    %v428 = vunpack.c.l.b16 %v142
    %v429 = vunpack.c.l.b16 %v143
    %v430 = vunpack.c.l.b16 %v144
    %v431 = vunpack.c.l.b16 %v145
    %v432 = vunpack.c.l.b16 %v146
    %v433 = vunpack.c.l.b16 %v147
    %v434 = vunpack.c.l.b16 %v148
    %v435 = vunpack.c.l.b16 %v149
    %v436 = vunpack.c.l.b16 %v150
    %v437 = vunpack.c.l.b16 %v151
    %v438 = vunpack.c.l.b16 %v152
    %v439 = vunpack.c.l.b16 %v153
    %v440 = vunpack.c.l.b16 %v154
    %v441 = vunpack.c.l.b16 %v155
    %v442 = vunpack.c.l.b16 %v156
    %v443 = vunpack.c.l.b16 %v157
    %v444 = vunpack.c.l.b16 %v158
    %v445 = vunpack.c.l.b16 %v159
    %v446 = vunpack.c.l.b16 %v160
    %v447 = vunpack.c.l.b16 %v161
    %v448 = vunpack.c.l.b16 %v162
    %v449 = vunpack.c.l.b16 %v163
    %v450 = vunpack.c.l.b16 %v164
    %v451 = vunpack.c.l.b16 %v165
    %v452 = vunpack.c.l.b16 %v166
    %v453 = vunpack.c.l.b16 %v167
    %v454 = vunpack.c.l.b16 %v168
    %v455 = vunpack.c.l.b16 %v169
    %v456 = vunpack.c.l.b16 %v170
    %v457 = vunpack.c.l.b16 %v171
    %v458 = vunpack.c.l.b16 %v172
    %v459 = vunpack.c.l.b16 %v173
    %v460 = vunpack.c.l.b16 %v174
    %v461 = vunpack.c.l.b16 %v175
    %v462 = vunpack.c.l.b16 %v176
    %v463 = vunpack.c.l.b16 %v177
    %v464 = vunpack.c.l.b16 %v178
    %v465 = vunpack.c.l.b16 %v179
    %v466 = vunpack.c.l.b16 %v180
    %v467 = vunpack.c.l.b16 %v181
    %v468 = vunpack.c.l.b16 %v182
    %v469 = vunpack.c.l.b16 %v183
    %v470 = vunpack.c.l.b16 %v184
    %v471 = vunpack.c.l.b16 %v185
    %v472 = vunpack.c.l.b16 %v186
    %v473 = vunpack.c.l.b16 %v187
    %v474 = vunpack.c.l.b16 %v188
    %v475 = vunpack.c.l.b16 %v189
    %v476 = vunpack.c.l.b16 %v190
    %v477 = vunpack.c.l.b16 %v191
    %v478 = vunpack.c.l.b16 %v192
    %v479 = vunpack.c.l.b16 %v193
    %v480 = vunpack.c.l.b16 %v194
    %v481 = vunpack.c.l.b16 %v195
    %v482 = vunpack.c.l.b16 %v196
    %v483 = vunpack.c.l.b16 %v197
    %v484 = vunpack.c.l.b16 %v198
    %v485 = vunpack.c.l.b16 %v199
    %v486 = vunpack.c.l.b16 %v200
    %v487 = vunpack.c.l.b16 %v201
    %v488 = vunpack.c.l.b16 %v202
    %v489 = vunpack.c.l.b16 %v203
    %v490 = vunpack.c.l.b16 %v204
    %v491 = vunpack.c.l.b16 %v205
    %v492 = vunpack.c.l.b16 %v206
    %v493 = vunpack.c.l.b16 %v207
    %v494 = vunpack.c.l.b16 %v208
    %v495 = vunpack.c.l.b16 %v209
    %v496 = vunpack.c.l.b16 %v210
    %v497 = vunpack.c.l.b16 %v211
    %v498 = vunpack.c.l.b16 %v212
    %v499 = vunpack.c.l.b16 %v213
    %v500 = vunpack.c.l.b16 %v214
    %v501 = vunpack.c.l.b16 %v215
    %v502 = vunpack.c.l.b16 %v216
    %v503 = vunpack.c.l.b16 %v217
    %v504 = vunpack.c.l.b16 %v218
    %v505 = vunpack.c.l.b16 %v219
    %v506 = vunpack.c.l.b16 %v220
    %v507 = vunpack.c.l.b16 %v221
    %v508 = vunpack.c.l.b16 %v222
    %v509 = vunpack.c.l.b16 %v223
    %v510 = vunpack.c.l.b16 %v224
    %v511 = vunpack.c.l.b16 %v225
    %v512 = vunpack.c.l.b16 %v226
    %v513 = vpack.c.b16 %v386, %v385
    %v514 = vpack.c.b16 %v388, %v387
    %v515 = vpack.c.b16 %v390, %v389
    %v516 = vpack.c.b16 %v392, %v391
    %v517 = vpack.c.b16 %v394, %v393
    %v518 = vpack.c.b16 %v396, %v395
    %v519 = vpack.c.b16 %v398, %v397
    %v520 = vpack.c.b16 %v400, %v399
    %v521 = vpack.c.b16 %v402, %v401
    %v522 = vpack.c.b16 %v404, %v403
    %v523 = vpack.c.b16 %v406, %v405
    %v524 = vpack.c.b16 %v408, %v407
    %v525 = vpack.c.b16 %v410, %v409
    %v526 = vpack.c.b16 %v412, %v411
    %v527 = vpack.c.b16 %v414, %v413
    %v528 = vpack.c.b16 %v416, %v415
    %v529 = vpack.c.b16 %v418, %v417
    %v530 = vpack.c.b16 %v420, %v419
    %v531 = vpack.c.b16 %v422, %v421
    %v532 = vpack.c.b16 %v424, %v423
    %v533 = vpack.c.b16 %v426, %v425
    %v534 = vpack.c.b16 %v428, %v427
    %v535 = vpack.c.b16 %v430, %v429
    %v536 = vpack.c.b16 %v432, %v431
    %v537 = vpack.c.b16 %v434, %v433
    %v538 = vpack.c.b16 %v436, %v435
    %v539 = vpack.c.b16 %v438, %v437
    %v540 = vpack.c.b16 %v440, %v439
    %v541 = vpack.c.b16 %v442, %v441
    %v542 = vpack.c.b16 %v444, %v443
    %v543 = vpack.c.b16 %v446, %v445
    %v544 = vpack.c.b16 %v448, %v447
    %v545 = vpack.c.b16 %v450, %v449
    %v546 = vpack.c.b16 %v452, %v451
    %v547 = vpack.c.b16 %v454, %v453
    %v548 = vpack.c.b16 %v456, %v455
    %v549 = vpack.c.b16 %v458, %v457
    %v550 = vpack.c.b16 %v460, %v459
    %v551 = vpack.c.b16 %v462, %v461
    %v552 = vpack.c.b16 %v464, %v463
    %v553 = vpack.c.b16 %v466, %v465
    %v554 = vpack.c.b16 %v468, %v467
    %v555 = vpack.c.b16 %v470, %v469
    %v556 = vpack.c.b16 %v472, %v471
    %v557 = vpack.c.b16 %v474, %v473
    %v558 = vpack.c.b16 %v476, %v475
    %v559 = vpack.c.b16 %v478, %v477
    %v560 = vpack.c.b16 %v480, %v479
    %v561 = vpack.c.b16 %v482, %v481
    %v562 = vpack.c.b16 %v484, %v483
    %v563 = vpack.c.b16 %v486, %v485
    %v564 = vpack.c.b16 %v488, %v487
    %v565 = vpack.c.b16 %v490, %v489
    %v566 = vpack.c.b16 %v492, %v491
    %v567 = vpack.c.b16 %v494, %v493
    %v568 = vpack.c.b16 %v496, %v495
    %v569 = vpack.c.b16 %v498, %v497
    %v570 = vpack.c.b16 %v500, %v499
    %v571 = vpack.c.b16 %v502, %v501
    %v572 = vpack.c.b16 %v504, %v503
    %v573 = vpack.c.b16 %v506, %v505
    %v574 = vpack.c.b16 %v508, %v507
    %v575 = vpack.c.b16 %v510, %v509
    %v576 = vpack.c.b16 %v512, %v511
    %641 = vmatpush.bf16.msra.mxu0 %v520
    %642 = vmatpush.bf16.msra.mxu0 %v519
    %643 = vmatpush.bf16.msra.mxu0 %v518
    %644 = vmatpush.bf16.msra.mxu0 %v517
    %645 = vmatpush.bf16.msra.mxu0 %v516
    %646 = vmatpush.bf16.msra.mxu0 %v515
    %647 = vmatpush.bf16.msra.mxu0 %v514
    %648 = vmatpush.bf16.msra.mxu0 %v513
    %649 = vmatmul.bf16.gmra.mxu0 %v241
    %v650 = vpop.f32.mrf.mxu0
    %v651 = vadd.f32 %v228, %v650
    %v652 = vpop.f32.mrf.mxu0
    %653 = vdwg.mxu0
    %654 = vmatpush.bf16.msra.mxu0 %v528
    %655 = vmatpush.bf16.msra.mxu0 %v527
    %656 = vmatpush.bf16.msra.mxu0 %v526
    %657 = vmatpush.bf16.msra.mxu0 %v525
    %658 = vmatpush.bf16.msra.mxu0 %v524
    %659 = vmatpush.bf16.msra.mxu0 %v523
    %660 = vmatpush.bf16.msra.mxu0 %v522
    %661 = vmatpush.bf16.msra.mxu0 %v521
    %662 = vmatmul.bf16.gmra.mxu0 %v242
    %v663 = vpop.f32.mrf.mxu0
    %v664 = vadd.f32 %v651, %v663
    %v665 = vpop.f32.mrf.mxu0
    %666 = vdwg.mxu0
    %667 = vmatpush.bf16.msra.mxu0 %v536
    %668 = vmatpush.bf16.msra.mxu0 %v535
    %669 = vmatpush.bf16.msra.mxu0 %v534
    %670 = vmatpush.bf16.msra.mxu0 %v533
    %671 = vmatpush.bf16.msra.mxu0 %v532
    %672 = vmatpush.bf16.msra.mxu0 %v531
    %673 = vmatpush.bf16.msra.mxu0 %v530
    %674 = vmatpush.bf16.msra.mxu0 %v529
    %675 = vmatmul.bf16.gmra.mxu0 %v243
    %v676 = vpop.f32.mrf.mxu0
    %v677 = vadd.f32 %v664, %v676
    %v678 = vpop.f32.mrf.mxu0
    %679 = vdwg.mxu0
    %680 = vmatpush.bf16.msra.mxu0 %v544
    %681 = vmatpush.bf16.msra.mxu0 %v543
    %682 = vmatpush.bf16.msra.mxu0 %v542
    %683 = vmatpush.bf16.msra.mxu0 %v541
    %684 = vmatpush.bf16.msra.mxu0 %v540
    %685 = vmatpush.bf16.msra.mxu0 %v539
    %686 = vmatpush.bf16.msra.mxu0 %v538
    %687 = vmatpush.bf16.msra.mxu0 %v537
    %688 = vmatmul.bf16.gmra.mxu0 %v244
    %v689 = vpop.f32.mrf.mxu0
    %v690 = vadd.f32 %v677, %v689
    %v691 = vpop.f32.mrf.mxu0
    %692 = vdwg.mxu0
    %693 = vmatpush.bf16.msra.mxu0 %v552
    %694 = vmatpush.bf16.msra.mxu0 %v551
    %695 = vmatpush.bf16.msra.mxu0 %v550
    %696 = vmatpush.bf16.msra.mxu0 %v549
    %697 = vmatpush.bf16.msra.mxu0 %v548
    %698 = vmatpush.bf16.msra.mxu0 %v547
    %699 = vmatpush.bf16.msra.mxu0 %v546
    %700 = vmatpush.bf16.msra.mxu0 %v545
    %701 = vmatmul.bf16.gmra.mxu0 %v245
    %v702 = vpop.f32.mrf.mxu0
    %v703 = vadd.f32 %v690, %v702
    %v704 = vpop.f32.mrf.mxu0
    %705 = vdwg.mxu0
    %706 = vmatpush.bf16.msra.mxu0 %v560
    %707 = vmatpush.bf16.msra.mxu0 %v559
    %708 = vmatpush.bf16.msra.mxu0 %v558
    %709 = vmatpush.bf16.msra.mxu0 %v557
    %710 = vmatpush.bf16.msra.mxu0 %v556
    %711 = vmatpush.bf16.msra.mxu0 %v555
    %712 = vmatpush.bf16.msra.mxu0 %v554
    %713 = vmatpush.bf16.msra.mxu0 %v553
    %714 = vmatmul.bf16.gmra.mxu0 %v246
    %v715 = vpop.f32.mrf.mxu0
    %v716 = vadd.f32 %v703, %v715
    %v717 = vpop.f32.mrf.mxu0
    %718 = vdwg.mxu0
    %719 = vmatpush.bf16.msra.mxu0 %v568
    %720 = vmatpush.bf16.msra.mxu0 %v567
    %721 = vmatpush.bf16.msra.mxu0 %v566
    %722 = vmatpush.bf16.msra.mxu0 %v565
    %723 = vmatpush.bf16.msra.mxu0 %v564
    %724 = vmatpush.bf16.msra.mxu0 %v563
    %725 = vmatpush.bf16.msra.mxu0 %v562
    %726 = vmatpush.bf16.msra.mxu0 %v561
    %727 = vmatmul.bf16.gmra.mxu0 %v247
    %v728 = vpop.f32.mrf.mxu0
    %v729 = vadd.f32 %v716, %v728
    %v730 = vpop.f32.mrf.mxu0
    %731 = vdwg.mxu0
    %732 = vmatpush.bf16.msra.mxu0 %v576
    %733 = vmatpush.bf16.msra.mxu0 %v575
    %734 = vmatpush.bf16.msra.mxu0 %v574
    %735 = vmatpush.bf16.msra.mxu0 %v573
    %736 = vmatpush.bf16.msra.mxu0 %v572
    %737 = vmatpush.bf16.msra.mxu0 %v571
    %738 = vmatpush.bf16.msra.mxu0 %v570
    %739 = vmatpush.bf16.msra.mxu0 %v569
    %740 = vmatmul.bf16.gmra.mxu0 %v248
    %v741 = vpop.f32.mrf.mxu0
    %v742 = vadd.f32 %v729, %v741
    %v743 = vpop.f32.mrf.mxu0
    %744 = vdwg.mxu0
    %v745 = vmax.f32 %v742, 0.0
    %v746 = vpack.c.bf16 %v745, %v745
    %v747 = vld [vmem:[#allocation7] sm:$0xf]
    %v748 = vld [vmem:[#allocation7 + $0x4] sm:$0xf]
    %v749 = vld [vmem:[#allocation7 + $0x8] sm:$0xf]
    %v750 = vld [vmem:[#allocation7 + $0xc] sm:$0xf]
    %v751 = vld [vmem:[#allocation7 + $0x10] sm:$0xf]
    %v752 = vld [vmem:[#allocation7 + $0x14] sm:$0xf]
    %v753 = vld [vmem:[#allocation7 + $0x18] sm:$0xf]
    %v754 = vld [vmem:[#allocation7 + $0x1c] sm:$0xf]
    %v755 = vld [vmem:[#allocation7 + $0x20] sm:$0xf]
    %v756 = vld [vmem:[#allocation7 + $0x24] sm:$0xf]
    %v757 = vld [vmem:[#allocation7 + $0x28] sm:$0xf]
    %v758 = vld [vmem:[#allocation7 + $0x2c] sm:$0xf]
    %v759 = vld [vmem:[#allocation7 + $0x30] sm:$0xf]
    %v760 = vld [vmem:[#allocation7 + $0x34] sm:$0xf]
    %v761 = vld [vmem:[#allocation7 + $0x38] sm:$0xf]
    %v762 = vld [vmem:[#allocation7 + $0x3c] sm:$0xf]
    %v763 = vld [vmem:[#allocation10 + $0x1] sm:$0x1]
    %v764 = vperm.slane %v763, 0
    %v781 = vunpack.c.l.b16 %v747
    %v782 = vunpack.c.l.b16 %v748
    %v783 = vunpack.c.l.b16 %v749
    %v784 = vunpack.c.l.b16 %v750
    %v785 = vunpack.c.l.b16 %v751
    %v786 = vunpack.c.l.b16 %v752
    %v787 = vunpack.c.l.b16 %v753
    %v788 = vunpack.c.l.b16 %v754
    %v789 = vunpack.c.l.b16 %v755
    %v790 = vunpack.c.l.b16 %v756
    %v791 = vunpack.c.l.b16 %v757
    %v792 = vunpack.c.l.b16 %v758
    %v793 = vunpack.c.l.b16 %v759
    %v794 = vunpack.c.l.b16 %v760
    %v795 = vunpack.c.l.b16 %v761
    %v796 = vunpack.c.l.b16 %v762
    %v797 = vpack.c.b16 %v782, %v781
    %v798 = vpack.c.b16 %v784, %v783
    %v799 = vpack.c.b16 %v786, %v785
    %v800 = vpack.c.b16 %v788, %v787
    %v801 = vpack.c.b16 %v790, %v789
    %v802 = vpack.c.b16 %v792, %v791
    %v803 = vpack.c.b16 %v794, %v793
    %v804 = vpack.c.b16 %v796, %v795
    %813 = vmatpush.bf16.msra.mxu0 %v804
    %814 = vmatpush.bf16.msra.mxu0 %v803
    %815 = vmatpush.bf16.msra.mxu0 %v802
    %816 = vmatpush.bf16.msra.mxu0 %v801
    %817 = vmatpush.bf16.msra.mxu0 %v800
    %818 = vmatpush.bf16.msra.mxu0 %v799
    %819 = vmatpush.bf16.msra.mxu0 %v798
    %820 = vmatpush.bf16.msra.mxu0 %v797
    %821 = vmatmul.bf16.gmra.mxu0 %v746
    %v822 = vpop.f32.mrf.mxu0
    %v823 = vadd.f32 %v764, %v822
    %v824 = vpop.f32.mrf.mxu0
    %825 = vdwg.mxu0
    %v826 = vmax.f32 %v823, 0.0
    %v827 = vpack.c.bf16 %v826, %v826
    %v828 = vld [vmem:[#allocation8] sm:$0xf]
    %v829 = vld [vmem:[#allocation8 + $0x4] sm:$0xf]
    %v830 = vld [vmem:[#allocation8 + $0x8] sm:$0xf]
    %v831 = vld [vmem:[#allocation8 + $0xc] sm:$0xf]
    %v832 = vld [vmem:[#allocation8 + $0x10] sm:$0xf]
    %v833 = vld [vmem:[#allocation8 + $0x14] sm:$0xf]
    %v834 = vld [vmem:[#allocation8 + $0x18] sm:$0xf]
    %v835 = vld [vmem:[#allocation8 + $0x1c] sm:$0xf]
    %v836 = vld [vmem:[#allocation8 + $0x20] sm:$0xf]
    %v837 = vld [vmem:[#allocation8 + $0x24] sm:$0xf]
    %v838 = vld [vmem:[#allocation8 + $0x28] sm:$0xf]
    %v839 = vld [vmem:[#allocation8 + $0x2c] sm:$0xf]
    %v840 = vld [vmem:[#allocation8 + $0x30] sm:$0xf]
    %v841 = vld [vmem:[#allocation8 + $0x34] sm:$0xf]
    %v842 = vld [vmem:[#allocation8 + $0x38] sm:$0xf]
    %v843 = vld [vmem:[#allocation8 + $0x3c] sm:$0xf]
    %v844 = vld [vmem:[#allocation10 + $0x2] sm:$0x1]
    %v845 = vperm.slane %v844, 0
    %v862 = vunpack.c.l.b16 %v828
    %v863 = vunpack.c.l.b16 %v829
    %v864 = vunpack.c.l.b16 %v830
    %v865 = vunpack.c.l.b16 %v831
    %v866 = vunpack.c.l.b16 %v832
    %v867 = vunpack.c.l.b16 %v833
    %v868 = vunpack.c.l.b16 %v834
    %v869 = vunpack.c.l.b16 %v835
    %v870 = vunpack.c.l.b16 %v836
    %v871 = vunpack.c.l.b16 %v837
    %v872 = vunpack.c.l.b16 %v838
    %v873 = vunpack.c.l.b16 %v839
    %v874 = vunpack.c.l.b16 %v840
    %v875 = vunpack.c.l.b16 %v841
    %v876 = vunpack.c.l.b16 %v842
    %v877 = vunpack.c.l.b16 %v843
    %v878 = vpack.c.b16 %v863, %v862
    %v879 = vpack.c.b16 %v865, %v864
    %v880 = vpack.c.b16 %v867, %v866
    %v881 = vpack.c.b16 %v869, %v868
    %v882 = vpack.c.b16 %v871, %v870
    %v883 = vpack.c.b16 %v873, %v872
    %v884 = vpack.c.b16 %v875, %v874
    %v885 = vpack.c.b16 %v877, %v876
    %894 = vmatpush.bf16.msra.mxu0 %v885
    %895 = vmatpush.bf16.msra.mxu0 %v884
    %896 = vmatpush.bf16.msra.mxu0 %v883
    %897 = vmatpush.bf16.msra.mxu0 %v882
    %898 = vmatpush.bf16.msra.mxu0 %v881
    %899 = vmatpush.bf16.msra.mxu0 %v880
    %900 = vmatpush.bf16.msra.mxu0 %v879
    %901 = vmatpush.bf16.msra.mxu0 %v878
    %902 = vmatmul.bf16.gmra.mxu0 %v827
    %v903 = vpop.f32.mrf.mxu0
    %v904 = vadd.f32 %v845, %v903
    %v905 = vpop.f32.mrf.mxu0
    %906 = vdwg.mxu0
    %907 = vst [vmem:[#allocation11] sm:$0xff] %v904
    // Predicated region
    $region42: #{tpu_custom_call.1} parent=1 // pred_check
      _
    $region43: #{tpu_custom_call.1} parent=1 // pred_check_branch
      %909 = sbr.rel (0) target = $region45
    $region44: #{tpu_custom_call.1} parent=1 // pred_region
      %911 = vsyncadd [#allocation4], 0
      %s913 = sshll.u32 [#allocation11], 4
      %s914 = int_to_ptr.vmem [resolvable:$true] %s913
      %s915 = sshll.u32 %s5, 4
      %s916 = int_to_ptr.hbm [resolvable:$true] %s915
      %918 = dma.vmem_to_hbm [thread:$0]  %s914, 128, %s916, [#allocation4]
    $region45: #{tpu_custom_call.1} parent=1 // pred_fallthru
      _
    // Predicated region
    $region46: #{tpu_custom_call.1} parent=1 // pred_check
      _
    $region47: #{tpu_custom_call.1} parent=1 // pred_check_branch
      %920 = sbr.rel (0) target = $region49
    $region48: #{tpu_custom_call.1} parent=1 // pred_region
      %922 = dma.done [#allocation4], 128
    $region49: #{tpu_custom_call.1} parent=1 // pred_fallthru
      _
    %923 = vsyncpa [#allocation3], 1
    %924 = vsyncpa [#allocation6], 1
    %925 = vsyncpa [#allocation9], 1
    %926 = vsyncpa [#allocation4], 1

</llo_original>
